<compile_context>
chip_gen: v6e
topology: v6e:2x2x1
jax: 0.10.0
libtpu: 0.0.40
codegen_flags: <defaults>
</compile_context>

<pallas_src>
import jax
import jax.numpy as jnp
from jax.experimental import pallas as pl
from jax.experimental.pallas import tpu as pltpu


# ----------------------------- Pallas kernel --------------------------------
def encoder_kernel(
    species_ref, idx_i_ref, idx_j_ref, idx_jrow_ref, eattr_ref, evec_ref,
    embW_ref,
    bW1_ref, bb1_ref, bW2_ref, bb2_ref,
    svW1_ref, svb1_ref, svW2_ref, svb2_ref,
    hW1_ref, hb1_ref, hW2_ref, hb2_ref,
    hv_ref, eemb_ref,
    f_sc,
):
    f32 = jnp.float32
    bf16 = jnp.bfloat16
    N = species_ref.shape[0]
    S = embW_ref.shape[0]
    D = embW_ref.shape[1]
    TE = idx_i_ref.shape[0]

    step = pl.program_id(0)
    last = pl.num_programs(0) - 1

    def silu(x):
        return x * jax.lax.logistic(x)

    # ---- one-time setup: node embeddings + zeroed fused accumulator ----------
    @pl.when(step == 0)
    def _init():
        sp = species_ref[...]                                           # (N, 1)
        oh_sp = (sp == jax.lax.broadcasted_iota(jnp.int32, (N, S), 1)).astype(f32)
        f_sc[...] = jnp.dot(oh_sp, embW_ref[...], preferred_element_type=f32)
        hv_ref[...] = jnp.zeros_like(hv_ref)                            # (N, 4D)

    f = f_sc[...]                                                       # (N, D) f32

    # ---- fused gather f[i], f[j]: one (2*TE, N) @ (N, D) f32 matmul ----------
    ii = idx_i_ref[...]                                                 # (TE, 1)
    jj = idx_j_ref[...]                                                 # (TE, 1)
    iota_en = jax.lax.broadcasted_iota(jnp.int32, (TE, N), 1)
    oh_ij = jnp.concatenate(
        [(ii == iota_en).astype(f32), (jj == iota_en).astype(f32)], axis=0)
    f_ij = jnp.dot(oh_ij, f, preferred_element_type=f32)                # (2TE, D)
    f_i = f_ij[:TE]
    f_j = f_ij[TE:]

    # ---- embed_bond MLP (bf16 operands, f32 accumulate) -----------------------
    hb = silu(jnp.dot(eattr_ref[...], bW1_ref[...], preferred_element_type=f32)
              + bb1_ref[...])
    eemb = (jnp.dot(hb.astype(bf16), bW2_ref[...], preferred_element_type=f32)
            + bb2_ref[...])
    eemb_ref[...] = eemb                                                # (TE, edge_dim)

    # ---- fused phi_s / phi_v (shared input e), bf16 matmuls -------------------
    e16 = jnp.concatenate([f_i, f_j, eemb], axis=-1).astype(bf16)       # (TE, 2D+edge_dim)
    h_sv = silu(jnp.dot(e16, svW1_ref[...], preferred_element_type=f32)
                + svb1_ref[...])
    sv = (jnp.dot(h_sv.astype(bf16), svW2_ref[...], preferred_element_type=f32)
          + svb2_ref[...])                                              # (TE, 2D) f32
    s_msg = sv[:, :D] * f_i                                             # phi_s(e) * f[i]
    pv = sv[:, D:]                                                      # phi_v(e)

    # ---- transposed scatter one-hot built lane-major (no .T) ------------------
    jrow = idx_jrow_ref[0]                                              # (1, TE)
    oh_jT = (jrow == jax.lax.broadcasted_iota(jnp.int32, (N, TE), 0)).astype(f32)

    # ---- fused scatter: one (N,TE)@(TE,4D) f32 matmul into the output ref -----
    ev = evec_ref[...]                                                  # (TE, 3) f32
    rhs = jnp.concatenate(
        [s_msg, pv * ev[:, 0:1], pv * ev[:, 1:2], pv * ev[:, 2:3]], axis=-1)
    hv_ref[...] += jnp.dot(oh_jT, rhs, preferred_element_type=f32)      # (N, 4D)

    # ---- finalize: phi_h consumes agg, overwrites first D lanes ---------------
    @pl.when(step == last)
    def _finalize():
        acc = hv_ref[...]                                               # (N, 4D)
        h_in = jnp.concatenate([f, acc[:, :D]], axis=-1).astype(bf16)   # (N, 2D)
        hh = silu(jnp.dot(h_in, hW1_ref[...], preferred_element_type=f32)
                  + hb1_ref[...])
        h0 = (jnp.dot(hh.astype(bf16), hW2_ref[...], preferred_element_type=f32)
              + hb2_ref[...])
        hv_ref[...] = jnp.concatenate([h0, acc[:, D:]], axis=-1)        # lane-dense store


# ------------------------------ wrapper --------------------------------------
def encoder_forward(species, edge_index, edge_attr, edge_vec, params, *,
                    edge_tile=None):
    MiB = 1024 * 1024
    N = species.shape[0]
    E = edge_index.shape[1]
    S = params["embed_W"].shape[0]
    D = params["embed_W"].shape[1]
    edge_dim = params["bond_W2"].shape[1]
    init_edge_dim = edge_attr.shape[1]
    din = 2 * D + edge_dim

    # Per-generation physical VMEM (v7x: 64 MiB; v5e/v6e: 128 MiB).
    try:
        vmem_cap = int(pltpu.get_tpu_info().vmem_capacity_bytes)
    except Exception:
        vmem_cap = 64 * MiB                      # conservative fallback
    vmem_cap = max(32 * MiB, vmem_cap)

    if edge_tile is None:
        # Honest per-edge VMEM bytes while a tile is live: 3 one-hot planes
        # (12*N), double-buffered streamed blocks, and activation temporaries.
        per_edge = 12 * N + 6 * din + 40 * D + 8 * edge_dim + 4 * init_edge_dim + 48
        budget = max(4 * MiB, vmem_cap // 3)
        te = budget // max(per_edge, 1)
        te = max(8, min(1024, (te // 8) * 8))
        edge_tile = min(te, max(8, -(-E // 8) * 8))
    TE = int(edge_tile)
    num_tiles = -(-E // TE)
    E_pad = num_tiles * TE
    pad = E_pad - E

    # Pad edges; padded entries use node index N (out of range -> zero one-hots).
    idx_i = jnp.pad(edge_index[0].astype(jnp.int32), (0, pad), constant_values=N)
    idx_j = jnp.pad(edge_index[1].astype(jnp.int32), (0, pad), constant_values=N)
    eattr = jnp.pad(edge_attr.astype(jnp.float32), ((0, pad), (0, 0))).astype(jnp.bfloat16)
    evec = jnp.pad(edge_vec.astype(jnp.float32), ((0, pad), (0, 0)))

    species_2d = species.astype(jnp.int32).reshape(N, 1)
    idx_i_c = idx_i.reshape(E_pad, 1)                 # sublane-major (gather one-hots)
    idx_j_c = idx_j.reshape(E_pad, 1)
    idx_j_r = idx_j.reshape(num_tiles, 1, TE)         # lane-major (scatter one-hot)

    # Fused phi_s / phi_v weights (block-diagonal second layer).
    f32w = lambda w: w.astype(jnp.float32)
    b16w = lambda w: w.astype(jnp.bfloat16)
    svW1 = jnp.concatenate([params["s_W1"], params["v_W1"]], axis=1)    # (din, 2D)
    svb1 = jnp.concatenate([params["s_b1"], params["v_b1"]], axis=1)
    svW2 = jnp.zeros((2 * D, 2 * D), jnp.float32)
    svW2 = svW2.at[:D, :D].set(params["s_W2"]).at[D:, D:].set(params["v_W2"])
    svb2 = jnp.concatenate([params["s_b2"], params["v_b2"]], axis=1)

    weights = [
        f32w(params["embed_W"]),
        b16w(params["bond_W1"]), f32w(params["bond_b1"]),
        b16w(params["bond_W2"]), f32w(params["bond_b2"]),
        b16w(svW1), f32w(svb1), b16w(svW2), f32w(svb2),
        b16w(params["h_W1"]), f32w(params["h_b1"]),
        b16w(params["h_W2"]), f32w(params["h_b2"]),
    ]

    def const_spec(arr):                               # resident (block index never changes)
        return pl.BlockSpec(arr.shape, lambda i: (0, 0))

    in_specs = [
        const_spec(species_2d),
        pl.BlockSpec((TE, 1), lambda i: (i, 0)),
        pl.BlockSpec((TE, 1), lambda i: (i, 0)),
        pl.BlockSpec((1, 1, TE), lambda i: (i, 0, 0)),
        pl.BlockSpec((TE, init_edge_dim), lambda i: (i, 0)),
        pl.BlockSpec((TE, 3), lambda i: (i, 0)),
    ] + [const_spec(w) for w in weights]

    out_specs = (
        pl.BlockSpec((N, 4 * D), lambda i: (0, 0)),        # [h0 | v0x | v0y | v0z]
        pl.BlockSpec((TE, edge_dim), lambda i: (i, 0)),
    )
    out_shapes = (
        jax.ShapeDtypeStruct((N, 4 * D), jnp.float32),
        jax.ShapeDtypeStruct((E_pad, edge_dim), jnp.float32),
    )
    scratch = [pltpu.VMEM((N, D), jnp.float32)]            # f (node embeddings)

    # VMEM budget estimate (weights x2 for buffering, streamed edge blocks x2,
    # one-hot planes, activation temporaries), clamped below physical capacity.
    resident = 2 * sum(int(w.size) * w.dtype.itemsize for w in weights)
    resident += 2 * N * 4 + 2 * N * 16 * D + N * D * 4
    streamed = 2 * TE * (4 + 4 + 4 + 2 * init_edge_dim + 12 + 4 * edge_dim)
    temps = 12 * TE * N + TE * (6 * din + 40 * D + 8 * edge_dim) + 4 * N * (S + 2 * D)
    est_bytes = resident + streamed + temps
    vmem_limit = int(min(vmem_cap - 4 * MiB, max(32 * MiB, 2 * est_bytes)))
    vmem_limit = max(vmem_limit, 16 * MiB)

    hv, eemb = pl.pallas_call(
        encoder_kernel,
        out_shape=out_shapes,
        grid_spec=pltpu.PrefetchScalarGridSpec(
            num_scalar_prefetch=0,
            grid=(num_tiles,),
            in_specs=in_specs,
            out_specs=out_specs,
            scratch_shapes=scratch,
        ),
        compiler_params=pltpu.CompilerParams(
            dimension_semantics=("arbitrary",),
            vmem_limit_bytes=vmem_limit,
        ),
    )(species_2d, idx_i_c, idx_j_c, idx_j_r, eattr, evec, *weights)

    h0 = hv[:, :D]
    v0 = jnp.transpose(hv[:, D:].reshape(N, 3, D), (0, 2, 1))   # (N, node_dim, 3)
    return h0, v0, eemb[:E]


# --------------------------- parameter setup ----------------------------------
def make_params(key, num_species, node_dim, init_edge_dim, edge_dim):
    def lin(k, fan_in, fan_out):
        kw, kb = jax.random.split(k)
        W = jax.random.normal(kw, (fan_in, fan_out), jnp.float32) * 0.1
        b = jax.random.normal(kb, (1, fan_out), jnp.float32) * 0.1
        return W, b

    keys = jax.random.split(key, 10)
    params = {}
    params["embed_W"] = jax.random.normal(
        keys[0], (num_species, node_dim), jnp.float32) * 0.1

    params["bond_W1"], params["bond_b1"] = lin(keys[1], init_edge_dim, edge_dim)
    params["bond_W2"], params["bond_b2"] = lin(keys[2], edge_dim, edge_dim)

    din_e = node_dim * 2 + edge_dim
    params["s_W1"], params["s_b1"] = lin(keys[3], din_e, node_dim)
    params["s_W2"], params["s_b2"] = lin(keys[4], node_dim, node_dim)

    params["h_W1"], params["h_b1"] = lin(keys[5], node_dim * 2, node_dim)
    params["h_W2"], params["h_b2"] = lin(keys[6], node_dim, node_dim)

    params["v_W1"], params["v_b1"] = lin(keys[7], din_e, node_dim)
    params["v_W2"], params["v_b2"] = lin(keys[8], node_dim, node_dim)
    return params


# --------------------------- pure-JAX reference --------------------------------
def encoder_reference(species, edge_index, edge_attr, edge_vec, params):
    def mlp(x, W1, b1, W2, b2):
        h = jax.nn.silu(x @ W1 + b1)
        return h @ W2 + b2

    N = species.shape[0]
    f = params["embed_W"][species]
    i, j = edge_index[0], edge_index[1]
    ea = mlp(edge_attr, params["bond_W1"], params["bond_b1"],
             params["bond_W2"], params["bond_b2"])
    e = jnp.concatenate([f[i], f[j], ea], axis=-1)
    s = mlp(e, params["s_W1"], params["s_b1"], params["s_W2"], params["s_b2"])
    agg = jax.ops.segment_sum(s * f[i], j, num_segments=N)
    h0 = mlp(jnp.concatenate([f, agg], axis=-1),
             params["h_W1"], params["h_b1"], params["h_W2"], params["h_b2"])
    pv = mlp(e, params["v_W1"], params["v_b1"], params["v_W2"], params["v_b2"])
    v0 = jax.ops.segment_sum(edge_vec[:, None, :] * pv[:, :, None], j,
                             num_segments=N)
    return h0, v0, ea


# ----------------------------------- main --------------------------------------
if __name__ == "__main__":
    configs = [
        # multi-step grid (E_pad / TE = 2), exercises accumulator init/finalize
        dict(num_species=5, node_dim=32, init_edge_dim=16, edge_dim=32,
             N=8, E=16, edge_tile=8),
        # E not a multiple of the tile -> exercises edge padding path
        dict(num_species=7, node_dim=32, init_edge_dim=16, edge_dim=32,
             N=16, E=37, edge_tile=16),
        # default (auto) edge-tile sizing path
        dict(num_species=5, node_dim=32, init_edge_dim=16, edge_dim=32,
             N=16, E=48, edge_tile=None),
    ]

    key = jax.random.PRNGKey(0)
    for cfg in configs:
        key, k_sp, k_ei, k_ea, k_ev, k_par = jax.random.split(key, 6)
        N, E = cfg["N"], cfg["E"]
        node_dim, edge_dim = cfg["node_dim"], cfg["edge_dim"]
        init_edge_dim, num_species = cfg["init_edge_dim"], cfg["num_species"]

        species = jax.random.randint(k_sp, (N,), 0, num_species, dtype=jnp.int32)
        edge_index = jax.random.randint(k_ei, (2, E), 0, N, dtype=jnp.int32)
        edge_attr = jax.random.normal(k_ea, (E, init_edge_dim), jnp.float32)
        edge_vec = jax.random.normal(k_ev, (E, 3), jnp.float32)

        params = make_params(k_par, num_species, node_dim, init_edge_dim, edge_dim)

        h0, v0, eemb = encoder_forward(species, edge_index, edge_attr, edge_vec,
                                       params, edge_tile=cfg["edge_tile"])
        jax.block_until_ready((h0, v0, eemb))

        h0_r, v0_r, eemb_r = encoder_reference(species, edge_index, edge_attr,
                                               edge_vec, params)

        assert h0.shape == (N, node_dim)
        assert v0.shape == (N, node_dim, 3)
        assert eemb.shape == (E, edge_dim)
        # bf16 MLP matmuls (f32 accumulate) -> relaxed tolerance vs f32 reference.
        assert jnp.allclose(h0, h0_r, atol=4e-2, rtol=4e-2)
        assert jnp.allclose(v0, v0_r, atol=4e-2, rtol=4e-2)
        assert jnp.allclose(eemb, eemb_r, atol=4e-2, rtol=4e-2)

    print("KERNEL_OK")
</pallas_src>

<mosaic_0001>
module attributes {stable_mosaic.version = 11 : i64} {
  func.func @encoder_kernel(%arg0: i32, %arg1: memref<8x1xi32, #tpu.memory_space<vmem>>, %arg2: memref<8x1xi32, #tpu.memory_space<vmem>>, %arg3: memref<8x1xi32, #tpu.memory_space<vmem>>, %arg4: memref<1x1x8xi32, #tpu.memory_space<vmem>>, %arg5: memref<8x16xbf16, #tpu.memory_space<vmem>>, %arg6: memref<8x3xf32, #tpu.memory_space<vmem>>, %arg7: memref<5x32xf32, #tpu.memory_space<vmem>>, %arg8: memref<16x32xbf16, #tpu.memory_space<vmem>>, %arg9: memref<1x32xf32, #tpu.memory_space<vmem>>, %arg10: memref<32x32xbf16, #tpu.memory_space<vmem>>, %arg11: memref<1x32xf32, #tpu.memory_space<vmem>>, %arg12: memref<96x64xbf16, #tpu.memory_space<vmem>>, %arg13: memref<1x64xf32, #tpu.memory_space<vmem>>, %arg14: memref<64x64xbf16, #tpu.memory_space<vmem>>, %arg15: memref<1x64xf32, #tpu.memory_space<vmem>>, %arg16: memref<64x32xbf16, #tpu.memory_space<vmem>>, %arg17: memref<1x32xf32, #tpu.memory_space<vmem>>, %arg18: memref<32x32xbf16, #tpu.memory_space<vmem>>, %arg19: memref<1x32xf32, #tpu.memory_space<vmem>>, %arg20: memref<8x128xf32, #tpu.memory_space<vmem>>, %arg21: memref<8x32xf32, #tpu.memory_space<vmem>>, %arg22: memref<8x32xf32, #tpu.memory_space<vmem>>) attributes {dimension_semantics = [#tpu.dimension_semantics<arbitrary>], iteration_bounds = array<i64: 2>, scalar_prefetch = 0 : i64, scratch_operands = 1 : i64, tpu.core_type = #tpu.core_type<tc>, window_params = [{pipeline_mode = #tpu.pipeline_mode<synchronous>, transform_indices = @transform_0, window_bounds = array<i64: 8, 1>}, {transform_indices = @transform_1, window_bounds = array<i64: 8, 1>}, {transform_indices = @transform_2, window_bounds = array<i64: 8, 1>}, {transform_indices = @transform_3, window_bounds = array<i64: 1, 1, 8>}, {transform_indices = @transform_4, window_bounds = array<i64: 8, 16>}, {transform_indices = @transform_5, window_bounds = array<i64: 8, 3>}, {pipeline_mode = #tpu.pipeline_mode<synchronous>, transform_indices = @transform_6, window_bounds = array<i64: 5, 32>}, {pipeline_mode = #tpu.pipeline_mode<synchronous>, transform_indices = @transform_7, window_bounds = array<i64: 16, 32>}, {pipeline_mode = #tpu.pipeline_mode<synchronous>, transform_indices = @transform_8, window_bounds = array<i64: 1, 32>}, {pipeline_mode = #tpu.pipeline_mode<synchronous>, transform_indices = @transform_9, window_bounds = array<i64: 32, 32>}, {pipeline_mode = #tpu.pipeline_mode<synchronous>, transform_indices = @transform_10, window_bounds = array<i64: 1, 32>}, {pipeline_mode = #tpu.pipeline_mode<synchronous>, transform_indices = @transform_11, window_bounds = array<i64: 96, 64>}, {pipeline_mode = #tpu.pipeline_mode<synchronous>, transform_indices = @transform_12, window_bounds = array<i64: 1, 64>}, {pipeline_mode = #tpu.pipeline_mode<synchronous>, transform_indices = @transform_13, window_bounds = array<i64: 64, 64>}, {pipeline_mode = #tpu.pipeline_mode<synchronous>, transform_indices = @transform_14, window_bounds = array<i64: 1, 64>}, {pipeline_mode = #tpu.pipeline_mode<synchronous>, transform_indices = @transform_15, window_bounds = array<i64: 64, 32>}, {pipeline_mode = #tpu.pipeline_mode<synchronous>, transform_indices = @transform_16, window_bounds = array<i64: 1, 32>}, {pipeline_mode = #tpu.pipeline_mode<synchronous>, transform_indices = @transform_17, window_bounds = array<i64: 32, 32>}, {pipeline_mode = #tpu.pipeline_mode<synchronous>, transform_indices = @transform_18, window_bounds = array<i64: 1, 32>}, {pipeline_mode = #tpu.pipeline_mode<synchronous>, transform_indices = @transform_19, window_bounds = array<i64: 8, 128>}, {transform_indices = @transform_20, window_bounds = array<i64: 8, 32>}]} {
    %c0_i32 = arith.constant 0 : i32
    %0 = arith.cmpi eq, %arg0, %c0_i32 : i32
    %1 = arith.extui %0 : i1 to i32
    %c0_i32_0 = arith.constant 0 : i32
    %2 = arith.cmpi ne, %1, %c0_i32_0 : i32
    scf.if %2 {
      %c0_43 = arith.constant 0 : index
      %c0_44 = arith.constant 0 : index
      %85 = vector.load %arg1[%c0_43, %c0_44] : memref<8x1xi32, #tpu.memory_space<vmem>>, vector<8x1xi32>
      %86 = tpu.iota {dimensions = array<i32: 1>} : vector<8x5xi32>
      %87 = vector.broadcast %85 : vector<8x1xi32> to vector<8x5xi32>
      %88 = arith.cmpi eq, %87, %86 : vector<8x5xi32>
      %89 = arith.extui %88 : vector<8x5xi1> to vector<8x5xi32>
      %90 = arith.sitofp %89 : vector<8x5xi32> to vector<8x5xf32>
      %c0_45 = arith.constant 0 : index
      %c0_46 = arith.constant 0 : index
      %91 = vector.load %arg7[%c0_45, %c0_46] : memref<5x32xf32, #tpu.memory_space<vmem>>, vector<5x32xf32>
      %cst_47 = arith.constant dense<0.000000e+00> : vector<8x32xf32>
      %92 = tpu.matmul %90, %91, %cst_47 {dimension_numbers = #tpu.dot_dimension_numbers<[1], [0], [0], [1], [0, 0, 1, 1], [], []>} : vector<8x5xf32>, vector<5x32xf32>, vector<8x32xf32> -> vector<8x32xf32>
      %c0_48 = arith.constant 0 : index
      %c0_49 = arith.constant 0 : index
      %93 = vector.load %arg22[%c0_48, %c0_49] : memref<8x32xf32, #tpu.memory_space<vmem>>, vector<8x32xf32>
      tpu.vector_store %arg22[%c0_48, %c0_49], %92 {strides = array<i32>} : memref<8x32xf32, #tpu.memory_space<vmem>>, vector<8x32xf32>,
      %cst_50 = arith.constant 0.000000e+00 : f32
      %94 = vector.broadcast %cst_50 : f32 to vector<8x128xf32>
      %c0_51 = arith.constant 0 : index
      %c0_52 = arith.constant 0 : index
      %95 = vector.load %arg20[%c0_51, %c0_52] : memref<8x128xf32, #tpu.memory_space<vmem>>, vector<8x128xf32>
      tpu.vector_store %arg20[%c0_51, %c0_52], %94 {strides = array<i32>} : memref<8x128xf32, #tpu.memory_space<vmem>>, vector<8x128xf32>,
    } else {
    }
    %c0 = arith.constant 0 : index
    %c0_1 = arith.constant 0 : index
    %3 = vector.load %arg22[%c0, %c0_1] : memref<8x32xf32, #tpu.memory_space<vmem>>, vector<8x32xf32>
    %c0_2 = arith.constant 0 : index
    %c0_3 = arith.constant 0 : index
    %4 = vector.load %arg2[%c0_2, %c0_3] : memref<8x1xi32, #tpu.memory_space<vmem>>, vector<8x1xi32>
    %c0_4 = arith.constant 0 : index
    %c0_5 = arith.constant 0 : index
    %5 = vector.load %arg3[%c0_4, %c0_5] : memref<8x1xi32, #tpu.memory_space<vmem>>, vector<8x1xi32>
    %6 = tpu.iota {dimensions = array<i32: 1>} : vector<8x8xi32>
    %7 = vector.broadcast %4 : vector<8x1xi32> to vector<8x8xi32>
    %8 = arith.cmpi eq, %7, %6 : vector<8x8xi32>
    %9 = arith.extui %8 : vector<8x8xi1> to vector<8x8xi32>
    %10 = arith.sitofp %9 : vector<8x8xi32> to vector<8x8xf32>
    %11 = vector.broadcast %5 : vector<8x1xi32> to vector<8x8xi32>
    %12 = arith.cmpi eq, %11, %6 : vector<8x8xi32>
    %13 = arith.extui %12 : vector<8x8xi1> to vector<8x8xi32>
    %14 = arith.sitofp %13 : vector<8x8xi32> to vector<8x8xf32>
    %15 = tpu.concatenate %10, %14 in 0 : vector<8x8xf32>, vector<8x8xf32> -> vector<16x8xf32>
    %cst = arith.constant dense<0.000000e+00> : vector<16x32xf32>
    %16 = tpu.matmul %15, %3, %cst {dimension_numbers = #tpu.dot_dimension_numbers<[1], [0], [0], [1], [0, 0, 1, 1], [], []>} : vector<16x8xf32>, vector<8x32xf32>, vector<16x32xf32> -> vector<16x32xf32>
    %17 = vector.extract_strided_slice %16 {offsets = [0, 0], sizes = [8, 32], strides = [1, 1]} : vector<16x32xf32> to vector<8x32xf32>
    %18 = vector.extract_strided_slice %16 {offsets = [8, 0], sizes = [8, 32], strides = [1, 1]} : vector<16x32xf32> to vector<8x32xf32>
    %c0_6 = arith.constant 0 : index
    %c0_7 = arith.constant 0 : index
    %19 = vector.load %arg5[%c0_6, %c0_7] : memref<8x16xbf16, #tpu.memory_space<vmem>>, vector<8x16xbf16>
    %c0_8 = arith.constant 0 : index
    %c0_9 = arith.constant 0 : index
    %20 = vector.load %arg8[%c0_8, %c0_9] : memref<16x32xbf16, #tpu.memory_space<vmem>>, vector<16x32xbf16>
    %cst_10 = arith.constant dense<0.000000e+00> : vector<8x32xf32>
    %21 = tpu.matmul %19, %20, %cst_10 {dimension_numbers = #tpu.dot_dimension_numbers<[1], [0], [0], [1], [0, 0, 1, 1], [], []>} : vector<8x16xbf16>, vector<16x32xbf16>, vector<8x32xf32> -> vector<8x32xf32>
    %c0_11 = arith.constant 0 : index
    %c0_12 = arith.constant 0 : index
    %22 = vector.load %arg9[%c0_11, %c0_12] : memref<1x32xf32, #tpu.memory_space<vmem>>, vector<1x32xf32>
    %23 = vector.broadcast %22 : vector<1x32xf32> to vector<8x32xf32>
    %24 = arith.addf %21, %23 : vector<8x32xf32>
    %25 = arith.negf %24 : vector<8x32xf32>
    %26 = math.exp %25 : vector<8x32xf32>
    %cst_13 = arith.constant 1.000000e+00 : f32
    %27 = vector.broadcast %cst_13 : f32 to vector<8x32xf32>
    %28 = arith.addf %27, %26 : vector<8x32xf32>
    %29 = arith.divf %27, %28 : vector<8x32xf32>
    %30 = arith.mulf %24, %29 : vector<8x32xf32>
    %31 = arith.truncf %30 : vector<8x32xf32> to vector<8x32xbf16>
    %c0_14 = arith.constant 0 : index
    %c0_15 = arith.constant 0 : index
    %32 = vector.load %arg10[%c0_14, %c0_15] : memref<32x32xbf16, #tpu.memory_space<vmem>>, vector<32x32xbf16>
    %cst_16 = arith.constant dense<0.000000e+00> : vector<8x32xf32>
    %33 = tpu.matmul %31, %32, %cst_16 {dimension_numbers = #tpu.dot_dimension_numbers<[1], [0], [0], [1], [0, 0, 1, 1], [], []>} : vector<8x32xbf16>, vector<32x32xbf16>, vector<8x32xf32> -> vector<8x32xf32>
    %c0_17 = arith.constant 0 : index
    %c0_18 = arith.constant 0 : index
    %34 = vector.load %arg11[%c0_17, %c0_18] : memref<1x32xf32, #tpu.memory_space<vmem>>, vector<1x32xf32>
    %35 = vector.broadcast %34 : vector<1x32xf32> to vector<8x32xf32>
    %36 = arith.addf %33, %35 : vector<8x32xf32>
    %c0_19 = arith.constant 0 : index
    %c0_20 = arith.constant 0 : index
    %37 = vector.load %arg21[%c0_19, %c0_20] : memref<8x32xf32, #tpu.memory_space<vmem>>, vector<8x32xf32>
    tpu.vector_store %arg21[%c0_19, %c0_20], %36 {strides = array<i32>} : memref<8x32xf32, #tpu.memory_space<vmem>>, vector<8x32xf32>,
    %38 = tpu.concatenate %17, %18, %36 in 1 : vector<8x32xf32>, vector<8x32xf32>, vector<8x32xf32> -> vector<8x96xf32>
    %39 = arith.truncf %38 : vector<8x96xf32> to vector<8x96xbf16>
    %c0_21 = arith.constant 0 : index
    %c0_22 = arith.constant 0 : index
    %40 = vector.load %arg12[%c0_21, %c0_22] : memref<96x64xbf16, #tpu.memory_space<vmem>>, vector<96x64xbf16>
    %cst_23 = arith.constant dense<0.000000e+00> : vector<8x64xf32>
    %41 = tpu.matmul %39, %40, %cst_23 {dimension_numbers = #tpu.dot_dimension_numbers<[1], [0], [0], [1], [0, 0, 1, 1], [], []>} : vector<8x96xbf16>, vector<96x64xbf16>, vector<8x64xf32> -> vector<8x64xf32>
    %c0_24 = arith.constant 0 : index
    %c0_25 = arith.constant 0 : index
    %42 = vector.load %arg13[%c0_24, %c0_25] : memref<1x64xf32, #tpu.memory_space<vmem>>, vector<1x64xf32>
    %43 = vector.broadcast %42 : vector<1x64xf32> to vector<8x64xf32>
    %44 = arith.addf %41, %43 : vector<8x64xf32>
    %45 = arith.negf %44 : vector<8x64xf32>
    %46 = math.exp %45 : vector<8x64xf32>
    %cst_26 = arith.constant 1.000000e+00 : f32
    %47 = vector.broadcast %cst_26 : f32 to vector<8x64xf32>
    %48 = arith.addf %47, %46 : vector<8x64xf32>
    %49 = arith.divf %47, %48 : vector<8x64xf32>
    %50 = arith.mulf %44, %49 : vector<8x64xf32>
    %51 = arith.truncf %50 : vector<8x64xf32> to vector<8x64xbf16>
    %c0_27 = arith.constant 0 : index
    %c0_28 = arith.constant 0 : index
    %52 = vector.load %arg14[%c0_27, %c0_28] : memref<64x64xbf16, #tpu.memory_space<vmem>>, vector<64x64xbf16>
    %cst_29 = arith.constant dense<0.000000e+00> : vector<8x64xf32>
    %53 = tpu.matmul %51, %52, %cst_29 {dimension_numbers = #tpu.dot_dimension_numbers<[1], [0], [0], [1], [0, 0, 1, 1], [], []>} : vector<8x64xbf16>, vector<64x64xbf16>, vector<8x64xf32> -> vector<8x64xf32>
    %c0_30 = arith.constant 0 : index
    %c0_31 = arith.constant 0 : index
    %54 = vector.load %arg15[%c0_30, %c0_31] : memref<1x64xf32, #tpu.memory_space<vmem>>, vector<1x64xf32>
    %55 = vector.broadcast %54 : vector<1x64xf32> to vector<8x64xf32>
    %56 = arith.addf %53, %55 : vector<8x64xf32>
    %57 = vector.extract_strided_slice %56 {offsets = [0, 0], sizes = [8, 32], strides = [1, 1]} : vector<8x64xf32> to vector<8x32xf32>
    %58 = arith.mulf %57, %17 : vector<8x32xf32>
    %59 = vector.extract_strided_slice %56 {offsets = [0, 32], sizes = [8, 32], strides = [1, 1]} : vector<8x64xf32> to vector<8x32xf32>
    %c0_32 = arith.constant 0 : index
    %c0_33 = arith.constant 0 : index
    %c0_34 = arith.constant 0 : index
    %60 = vector.load %arg4[%c0_32, %c0_33, %c0_34] : memref<1x1x8xi32, #tpu.memory_space<vmem>>, vector<1x1x8xi32>
    %61 = vector.shape_cast %60 : vector<1x1x8xi32> to vector<1x8xi32>
    %62 = tpu.iota {dimensions = array<i32: 0>} : vector<8x8xi32>
    %63 = vector.broadcast %61 : vector<1x8xi32> to vector<8x8xi32>
    %64 = arith.cmpi eq, %63, %62 : vector<8x8xi32>
    %65 = arith.extui %64 : vector<8x8xi1> to vector<8x8xi32>
    %66 = arith.sitofp %65 : vector<8x8xi32> to vector<8x8xf32>
    %c0_35 = arith.constant 0 : index
    %c0_36 = arith.constant 0 : index
    %67 = vector.load %arg6[%c0_35, %c0_36] : memref<8x3xf32, #tpu.memory_space<vmem>>, vector<8x3xf32>
    %68 = vector.extract_strided_slice %67 {offsets = [0, 0], sizes = [8, 1], strides = [1, 1]} : vector<8x3xf32> to vector<8x1xf32>
    %69 = vector.broadcast %68 : vector<8x1xf32> to vector<8x32xf32>
    %70 = arith.mulf %59, %69 : vector<8x32xf32>
    %71 = vector.extract_strided_slice %67 {offsets = [0, 1], sizes = [8, 1], strides = [1, 1]} : vector<8x3xf32> to vector<8x1xf32>
    %72 = vector.broadcast %71 : vector<8x1xf32> to vector<8x32xf32>
    %73 = arith.mulf %59, %72 : vector<8x32xf32>
    %74 = vector.extract_strided_slice %67 {offsets = [0, 2], sizes = [8, 1], strides = [1, 1]} : vector<8x3xf32> to vector<8x1xf32>
    %75 = vector.broadcast %74 : vector<8x1xf32> to vector<8x32xf32>
    %76 = arith.mulf %59, %75 : vector<8x32xf32>
    %77 = tpu.concatenate %58, %70, %73, %76 in 1 : vector<8x32xf32>, vector<8x32xf32>, vector<8x32xf32>, vector<8x32xf32> -> vector<8x128xf32>
    %c0_37 = arith.constant 0 : index
    %c0_38 = arith.constant 0 : index
    %78 = vector.load %arg20[%c0_37, %c0_38] : memref<8x128xf32, #tpu.memory_space<vmem>>, vector<8x128xf32>
    %cst_39 = arith.constant dense<0.000000e+00> : vector<8x128xf32>
    %79 = tpu.matmul %66, %77, %cst_39 {dimension_numbers = #tpu.dot_dimension_numbers<[1], [0], [0], [1], [0, 0, 1, 1], [], []>} : vector<8x8xf32>, vector<8x128xf32>, vector<8x128xf32> -> vector<8x128xf32>
    %80 = arith.addf %78, %79 : vector<8x128xf32>
    %c0_40 = arith.constant 0 : index
    %c0_41 = arith.constant 0 : index
    %81 = vector.load %arg20[%c0_40, %c0_41] : memref<8x128xf32, #tpu.memory_space<vmem>>, vector<8x128xf32>
    tpu.vector_store %arg20[%c0_40, %c0_41], %80 {strides = array<i32>} : memref<8x128xf32, #tpu.memory_space<vmem>>, vector<8x128xf32>,
    %c1_i32 = arith.constant 1 : i32
    %82 = arith.cmpi eq, %arg0, %c1_i32 : i32
    %83 = arith.extui %82 : i1 to i32
    %c0_i32_42 = arith.constant 0 : i32
    %84 = arith.cmpi ne, %83, %c0_i32_42 : i32
    scf.if %84 {
      %c0_43 = arith.constant 0 : index
      %c0_44 = arith.constant 0 : index
      %85 = vector.load %arg20[%c0_43, %c0_44] : memref<8x128xf32, #tpu.memory_space<vmem>>, vector<8x128xf32>
      %86 = vector.extract_strided_slice %85 {offsets = [0, 0], sizes = [8, 32], strides = [1, 1]} : vector<8x128xf32> to vector<8x32xf32>
      %87 = tpu.concatenate %3, %86 in 1 : vector<8x32xf32>, vector<8x32xf32> -> vector<8x64xf32>
      %88 = arith.truncf %87 : vector<8x64xf32> to vector<8x64xbf16>
      %c0_45 = arith.constant 0 : index
      %c0_46 = arith.constant 0 : index
      %89 = vector.load %arg16[%c0_45, %c0_46] : memref<64x32xbf16, #tpu.memory_space<vmem>>, vector<64x32xbf16>
      %cst_47 = arith.constant dense<0.000000e+00> : vector<8x32xf32>
      %90 = tpu.matmul %88, %89, %cst_47 {dimension_numbers = #tpu.dot_dimension_numbers<[1], [0], [0], [1], [0, 0, 1, 1], [], []>} : vector<8x64xbf16>, vector<64x32xbf16>, vector<8x32xf32> -> vector<8x32xf32>
      %c0_48 = arith.constant 0 : index
      %c0_49 = arith.constant 0 : index
      %91 = vector.load %arg17[%c0_48, %c0_49] : memref<1x32xf32, #tpu.memory_space<vmem>>, vector<1x32xf32>
      %92 = vector.broadcast %91 : vector<1x32xf32> to vector<8x32xf32>
      %93 = arith.addf %90, %92 : vector<8x32xf32>
      %94 = arith.negf %93 : vector<8x32xf32>
      %95 = math.exp %94 : vector<8x32xf32>
      %cst_50 = arith.constant 1.000000e+00 : f32
      %96 = vector.broadcast %cst_50 : f32 to vector<8x32xf32>
      %97 = arith.addf %96, %95 : vector<8x32xf32>
      %98 = arith.divf %96, %97 : vector<8x32xf32>
      %99 = arith.mulf %93, %98 : vector<8x32xf32>
      %100 = arith.truncf %99 : vector<8x32xf32> to vector<8x32xbf16>
      %c0_51 = arith.constant 0 : index
      %c0_52 = arith.constant 0 : index
      %101 = vector.load %arg18[%c0_51, %c0_52] : memref<32x32xbf16, #tpu.memory_space<vmem>>, vector<32x32xbf16>
      %cst_53 = arith.constant dense<0.000000e+00> : vector<8x32xf32>
      %102 = tpu.matmul %100, %101, %cst_53 {dimension_numbers = #tpu.dot_dimension_numbers<[1], [0], [0], [1], [0, 0, 1, 1], [], []>} : vector<8x32xbf16>, vector<32x32xbf16>, vector<8x32xf32> -> vector<8x32xf32>
      %c0_54 = arith.constant 0 : index
      %c0_55 = arith.constant 0 : index
      %103 = vector.load %arg19[%c0_54, %c0_55] : memref<1x32xf32, #tpu.memory_space<vmem>>, vector<1x32xf32>
      %104 = vector.broadcast %103 : vector<1x32xf32> to vector<8x32xf32>
      %105 = arith.addf %102, %104 : vector<8x32xf32>
      %106 = vector.extract_strided_slice %85 {offsets = [0, 32], sizes = [8, 96], strides = [1, 1]} : vector<8x128xf32> to vector<8x96xf32>
      %107 = tpu.concatenate %105, %106 in 1 : vector<8x32xf32>, vector<8x96xf32> -> vector<8x128xf32>
      %c0_56 = arith.constant 0 : index
      %c0_57 = arith.constant 0 : index
      %108 = vector.load %arg20[%c0_56, %c0_57] : memref<8x128xf32, #tpu.memory_space<vmem>>, vector<8x128xf32>
      tpu.vector_store %arg20[%c0_56, %c0_57], %107 {strides = array<i32>} : memref<8x128xf32, #tpu.memory_space<vmem>>, vector<8x128xf32>,
    } else {
    }
    return
  }
  func.func @transform_0(%arg0: i32) -> (i32, i32) {
    %c0_i32 = arith.constant 0 : i32
    %c0_i32_0 = arith.constant 0 : i32
    %c0_i32_1 = arith.constant 0 : i32
    return %c0_i32, %c0_i32_0 : i32, i32
  }
  func.func @transform_1(%arg0: i32) -> (i32, i32) {
    %c0_i32 = arith.constant 0 : i32
    %c0_i32_0 = arith.constant 0 : i32
    return %arg0, %c0_i32 : i32, i32
  }
  func.func @transform_2(%arg0: i32) -> (i32, i32) {
    %c0_i32 = arith.constant 0 : i32
    %c0_i32_0 = arith.constant 0 : i32
    return %arg0, %c0_i32 : i32, i32
  }
  func.func @transform_3(%arg0: i32) -> (i32, i32, i32) {
    %c0_i32 = arith.constant 0 : i32
    %c0_i32_0 = arith.constant 0 : i32
    %c0_i32_1 = arith.constant 0 : i32
    return %arg0, %c0_i32, %c0_i32_0 : i32, i32, i32
  }
  func.func @transform_4(%arg0: i32) -> (i32, i32) {
    %c0_i32 = arith.constant 0 : i32
    %c0_i32_0 = arith.constant 0 : i32
    return %arg0, %c0_i32 : i32, i32
  }
  func.func @transform_5(%arg0: i32) -> (i32, i32) {
    %c0_i32 = arith.constant 0 : i32
    %c0_i32_0 = arith.constant 0 : i32
    return %arg0, %c0_i32 : i32, i32
  }
  func.func @transform_6(%arg0: i32) -> (i32, i32) {
    %c0_i32 = arith.constant 0 : i32
    %c0_i32_0 = arith.constant 0 : i32
    %c0_i32_1 = arith.constant 0 : i32
    return %c0_i32, %c0_i32_0 : i32, i32
  }
  func.func @transform_7(%arg0: i32) -> (i32, i32) {
    %c0_i32 = arith.constant 0 : i32
    %c0_i32_0 = arith.constant 0 : i32
    %c0_i32_1 = arith.constant 0 : i32
    return %c0_i32, %c0_i32_0 : i32, i32
  }
  func.func @transform_8(%arg0: i32) -> (i32, i32) {
    %c0_i32 = arith.constant 0 : i32
    %c0_i32_0 = arith.constant 0 : i32
    %c0_i32_1 = arith.constant 0 : i32
    return %c0_i32, %c0_i32_0 : i32, i32
  }
  func.func @transform_9(%arg0: i32) -> (i32, i32) {
    %c0_i32 = arith.constant 0 : i32
    %c0_i32_0 = arith.constant 0 : i32
    %c0_i32_1 = arith.constant 0 : i32
    return %c0_i32, %c0_i32_0 : i32, i32
  }
  func.func @transform_10(%arg0: i32) -> (i32, i32) {
    %c0_i32 = arith.constant 0 : i32
    %c0_i32_0 = arith.constant 0 : i32
    %c0_i32_1 = arith.constant 0 : i32
    return %c0_i32, %c0_i32_0 : i32, i32
  }
  func.func @transform_11(%arg0: i32) -> (i32, i32) {
    %c0_i32 = arith.constant 0 : i32
    %c0_i32_0 = arith.constant 0 : i32
    %c0_i32_1 = arith.constant 0 : i32
    return %c0_i32, %c0_i32_0 : i32, i32
  }
  func.func @transform_12(%arg0: i32) -> (i32, i32) {
    %c0_i32 = arith.constant 0 : i32
    %c0_i32_0 = arith.constant 0 : i32
    %c0_i32_1 = arith.constant 0 : i32
    return %c0_i32, %c0_i32_0 : i32, i32
  }
  func.func @transform_13(%arg0: i32) -> (i32, i32) {
    %c0_i32 = arith.constant 0 : i32
    %c0_i32_0 = arith.constant 0 : i32
    %c0_i32_1 = arith.constant 0 : i32
    return %c0_i32, %c0_i32_0 : i32, i32
  }
  func.func @transform_14(%arg0: i32) -> (i32, i32) {
    %c0_i32 = arith.constant 0 : i32
    %c0_i32_0 = arith.constant 0 : i32
    %c0_i32_1 = arith.constant 0 : i32
    return %c0_i32, %c0_i32_0 : i32, i32
  }
  func.func @transform_15(%arg0: i32) -> (i32, i32) {
    %c0_i32 = arith.constant 0 : i32
    %c0_i32_0 = arith.constant 0 : i32
    %c0_i32_1 = arith.constant 0 : i32
    return %c0_i32, %c0_i32_0 : i32, i32
  }
  func.func @transform_16(%arg0: i32) -> (i32, i32) {
    %c0_i32 = arith.constant 0 : i32
    %c0_i32_0 = arith.constant 0 : i32
    %c0_i32_1 = arith.constant 0 : i32
    return %c0_i32, %c0_i32_0 : i32, i32
  }
  func.func @transform_17(%arg0: i32) -> (i32, i32) {
    %c0_i32 = arith.constant 0 : i32
    %c0_i32_0 = arith.constant 0 : i32
    %c0_i32_1 = arith.constant 0 : i32
    return %c0_i32, %c0_i32_0 : i32, i32
  }
  func.func @transform_18(%arg0: i32) -> (i32, i32) {
    %c0_i32 = arith.constant 0 : i32
    %c0_i32_0 = arith.constant 0 : i32
    %c0_i32_1 = arith.constant 0 : i32
    return %c0_i32, %c0_i32_0 : i32, i32
  }
  func.func @transform_19(%arg0: i32) -> (i32, i32) {
    %c0_i32 = arith.constant 0 : i32
    %c0_i32_0 = arith.constant 0 : i32
    %c0_i32_1 = arith.constant 0 : i32
    return %c0_i32, %c0_i32_0 : i32, i32
  }
  func.func @transform_20(%arg0: i32) -> (i32, i32) {
    %c0_i32 = arith.constant 0 : i32
    %c0_i32_0 = arith.constant 0 : i32
    return %arg0, %c0_i32 : i32, i32
  }
}

</mosaic_0001>

<llo_original>
// kernel: tpu_custom_call.1
$region0: #{tpu_custom_call.1}
  #allocation0 [shape = 'u32[]', space=smem, size = 0x4, offset = 0x4, fixed_abs, tag = 'smem constant byte address 0x4 - core index']
  #allocation1 [shape = 'u32[144,128]{1,0:T(1,128)}', space=vmem, size = 0x12000, scoped, tag = 'internal scratch']
  #allocation2 [shape = 'f32[8,32]{1,0:T(8,128)}', space=vmem, size = 0x1000, scoped, tag = 'scratch operand']
  %s0 = inlined_call_operand.vmem [shape: s32[8,1], index: 0, kind: input, shape index: {}]
  %s1 = inlined_call_operand.vmem [shape: s32[16,1], index: 1, kind: input, shape index: {}]
  %s2 = inlined_call_operand.vmem [shape: s32[16,1], index: 2, kind: input, shape index: {}]
  %s3 = inlined_call_operand.vmem [shape: s32[2,1,8], index: 3, kind: input, shape index: {}]
  %s4 = inlined_call_operand.vmem [shape: bf16[16,16], index: 4, kind: input, shape index: {}]
  %s5 = inlined_call_operand.vmem [shape: f32[16,3], index: 5, kind: input, shape index: {}]
  %s6 = inlined_call_operand.vmem [shape: f32[5,32], index: 6, kind: input, shape index: {}]
  %s7 = inlined_call_operand.vmem [shape: bf16[16,32], index: 7, kind: input, shape index: {}]
  %s8 = inlined_call_operand.vmem [shape: f32[1,32], index: 8, kind: input, shape index: {}]
  %s9 = inlined_call_operand.vmem [shape: bf16[32,32], index: 9, kind: input, shape index: {}]
  %s10 = inlined_call_operand.vmem [shape: f32[1,32], index: 10, kind: input, shape index: {}]
  %s11 = inlined_call_operand.vmem [shape: bf16[96,64], index: 11, kind: input, shape index: {}]
  %s12 = inlined_call_operand.vmem [shape: f32[1,64], index: 12, kind: input, shape index: {}]
  %s13 = inlined_call_operand.vmem [shape: bf16[64,64], index: 13, kind: input, shape index: {}]
  %s14 = inlined_call_operand.vmem [shape: f32[1,64], index: 14, kind: input, shape index: {}]
  %s15 = inlined_call_operand.vmem [shape: bf16[64,32], index: 15, kind: input, shape index: {}]
  %s16 = inlined_call_operand.vmem [shape: f32[1,32], index: 16, kind: input, shape index: {}]
  %s17 = inlined_call_operand.vmem [shape: bf16[32,32], index: 17, kind: input, shape index: {}]
  %s18 = inlined_call_operand.vmem [shape: f32[1,32], index: 18, kind: input, shape index: {}]
  %s19 = inlined_call_operand.hbm [shape: f32[8,128], index: 19, kind: output, shape index: {0}]
  %s20 = inlined_call_operand.hbm [shape: f32[16,32], index: 20, kind: output, shape index: {1}]
  %21 = xla_tuple %s19, %s20
  %s22 = sld [smem:[#allocation0]]
  $region125: #{tpu_custom_call.1} parent=0
    _
  %s24 = ssub.s32 1, %s22
  %s25 = scalar_select 0, %s24, %s22
  $region1: #{tpu_custom_call.1} parent=0
    #allocation3 [shape = 'u8[4096]{0}', space=vmem, size = 0x1000, scoped, tag = 'output window, operand 0, single buffered']
    #allocation4 [shape = 's32[2]{0}', space=sflag, size = 0x8, scoped, tag = 'scoped memory for tpu_custom_call.1']
    #allocation5 [shape = 'u8[8192]{0}', space=vmem, size = 0x2000, scoped, tag = 'output window, operand 1']
    #allocation6 [shape = 's32[2]{0}', space=sflag, size = 0x8, scoped, tag = 'scoped memory for tpu_custom_call.1']
    %26 = vsyncpa [#allocation4], 0
    %27 = vsyncpa [#allocation6], 0
    %s28 = scalar_lea.sflag [#allocation6], 1
    %29 = vsyncpa %s28, 0
    loop: start=0, step=1, limit=4
    $region2: #{tpu_custom_call.1} parent=1 // loop_pre_header
      _
    $region3: #{tpu_custom_call.1} parent=1 // loop_header
      %s31 = sphi 0, %s35
      %p32 = scmp.ge.s32.totalorder %s31, 4
      %s39 = sphi 0, %s39
      %s41 = sphi 0, %s39
      %s42 = sphi 0, %s41
      %s56 = sphi 0, %s42
      %s62 = sphi 0, %s64
      %s65 = sphi 0, %s62
      %s66 = sphi 0, %s65
      %s82 = sphi 0, %s66
      %s88 = sphi 0, %s90
      %s91 = sphi 0, %s88
      %s92 = sphi 0, %s91
      %s108 = sphi 0, %s92
      %s114 = sphi 0, %s116
      %s117 = sphi 0, %s114
      %s118 = sphi 0, %s117
      %s134 = sphi 0, %s118
      %s140 = sphi 0, %s142
      %s143 = sphi 0, %s140
      %s144 = sphi 0, %s143
      %s160 = sphi 0, %s144
      %s166 = sphi 0, %s168
      %s169 = sphi 0, %s166
      %s170 = sphi 0, %s169
      %s186 = sphi 0, %s170
      %s190 = sphi 0, %s190
      %s192 = sphi 0, %s190
      %s193 = sphi 0, %s192
      %s207 = sphi 0, %s193
      %s211 = sphi 0, %s211
      %s213 = sphi 0, %s211
      %s214 = sphi 0, %s213
      %s228 = sphi 0, %s214
      %s232 = sphi 0, %s232
      %s234 = sphi 0, %s232
      %s235 = sphi 0, %s234
      %s249 = sphi 0, %s235
      %s253 = sphi 0, %s253
      %s255 = sphi 0, %s253
      %s256 = sphi 0, %s255
      %s270 = sphi 0, %s256
      %s274 = sphi 0, %s274
      %s276 = sphi 0, %s274
      %s277 = sphi 0, %s276
      %s291 = sphi 0, %s277
      %s295 = sphi 0, %s295
      %s297 = sphi 0, %s295
      %s298 = sphi 0, %s297
      %s312 = sphi 0, %s298
      %s316 = sphi 0, %s316
      %s318 = sphi 0, %s316
      %s319 = sphi 0, %s318
      %s333 = sphi 0, %s319
      %s337 = sphi 0, %s337
      %s339 = sphi 0, %s337
      %s340 = sphi 0, %s339
      %s354 = sphi 0, %s340
      %s358 = sphi 0, %s358
      %s360 = sphi 0, %s358
      %s361 = sphi 0, %s360
      %s375 = sphi 0, %s361
      %s379 = sphi 0, %s379
      %s381 = sphi 0, %s379
      %s382 = sphi 0, %s381
      %s396 = sphi 0, %s382
      %s400 = sphi 0, %s400
      %s402 = sphi 0, %s400
      %s403 = sphi 0, %s402
      %s417 = sphi 0, %s403
      %s421 = sphi 0, %s421
      %s423 = sphi 0, %s421
      %s424 = sphi 0, %s423
      %s438 = sphi 0, %s424
      %s442 = sphi 0, %s442
      %s444 = sphi 0, %s442
      %s445 = sphi 0, %s444
      %s459 = sphi 0, %s445
      %s463 = sphi 0, %s463
      %s465 = sphi 0, %s463
      %s466 = sphi 0, %s465
      %s480 = sphi 0, %s466
      %s486 = sphi 0, %s488
      %s489 = sphi 0, %s486
      %s490 = sphi 0, %s489
      %s506 = sphi 0, %s490
    $region4: #{tpu_custom_call.1} parent=1 // loop_header_branch
      %34 = sbr.rel (%p32) target = $region8
    $region5: #{tpu_custom_call.1} parent=1 // loop_body
      %s36 = ssub.s32 %s31, 1
      %s37 = ssub.s32 %s31, 2
      %s38 = sadd.s32 %s31, 1
      %s40 = sadd.s32 %s39, 1
      %p43 = scmp.eq.s32.totalorder %s31, 1
      %p44 = scmp.ne.s32.totalorder %s39, %s41
      %p45 = scmp.eq.s32.totalorder %s31, 0
      %p46 = por %p44, %p45
      %p47 = scmp.ne.s32.totalorder %s39, %s41
      %p48 = scmp.eq.s32.totalorder %s36, 1
      %p49 = por %p47, %p48
      %p50 = scmp.ne.s32.totalorder %s41, %s42
      %p51 = scmp.eq.s32.totalorder %s36, 0
      %p52 = por %p50, %p51
      %p53 = scmp.ne.s32.totalorder %s41, %s42
      %p54 = scmp.eq.s32.totalorder %s37, 1
      %p55 = por %p53, %p54
      %p57 = scmp.ne.s32.totalorder %s42, %s56
      %p58 = scmp.eq.s32.totalorder %s37, 0
      %p59 = por %p57, %p58
      %s60 = ssub.s32 %s31, %s38
      %p61 = scmp.eq.s32.totalorder %s60, 0
      %s63 = sadd.s32 %s62, 1
      %s64 = scalar_select %p61, %s62, %s63
      %p67 = pneg %p61
      %p68 = scmp.eq.s32.totalorder %s31, 1
      %p69 = por %p67, %p68
      %p70 = scmp.ne.s32.totalorder %s62, %s65
      %p71 = scmp.eq.s32.totalorder %s31, 0
      %p72 = por %p70, %p71
      %p73 = scmp.ne.s32.totalorder %s62, %s65
      %p74 = scmp.eq.s32.totalorder %s36, 1
      %p75 = por %p73, %p74
      %p76 = scmp.ne.s32.totalorder %s65, %s66
      %p77 = scmp.eq.s32.totalorder %s36, 0
      %p78 = por %p76, %p77
      %p79 = scmp.ne.s32.totalorder %s65, %s66
      %p80 = scmp.eq.s32.totalorder %s37, 1
      %p81 = por %p79, %p80
      %p83 = scmp.ne.s32.totalorder %s66, %s82
      %p84 = scmp.eq.s32.totalorder %s37, 0
      %p85 = por %p83, %p84
      %s86 = ssub.s32 %s31, %s38
      %p87 = scmp.eq.s32.totalorder %s86, 0
      %s89 = sadd.s32 %s88, 1
      %s90 = scalar_select %p87, %s88, %s89
      %p93 = pneg %p87
      %p94 = scmp.eq.s32.totalorder %s31, 1
      %p95 = por %p93, %p94
      %p96 = scmp.ne.s32.totalorder %s88, %s91
      %p97 = scmp.eq.s32.totalorder %s31, 0
      %p98 = por %p96, %p97
      %p99 = scmp.ne.s32.totalorder %s88, %s91
      %p100 = scmp.eq.s32.totalorder %s36, 1
      %p101 = por %p99, %p100
      %p102 = scmp.ne.s32.totalorder %s91, %s92
      %p103 = scmp.eq.s32.totalorder %s36, 0
      %p104 = por %p102, %p103
      %p105 = scmp.ne.s32.totalorder %s91, %s92
      %p106 = scmp.eq.s32.totalorder %s37, 1
      %p107 = por %p105, %p106
      %p109 = scmp.ne.s32.totalorder %s92, %s108
      %p110 = scmp.eq.s32.totalorder %s37, 0
      %p111 = por %p109, %p110
      %s112 = ssub.s32 %s31, %s38
      %p113 = scmp.eq.s32.totalorder %s112, 0
      %s115 = sadd.s32 %s114, 1
      %s116 = scalar_select %p113, %s114, %s115
      %p119 = pneg %p113
      %p120 = scmp.eq.s32.totalorder %s31, 1
      %p121 = por %p119, %p120
      %p122 = scmp.ne.s32.totalorder %s114, %s117
      %p123 = scmp.eq.s32.totalorder %s31, 0
      %p124 = por %p122, %p123
      %p125 = scmp.ne.s32.totalorder %s114, %s117
      %p126 = scmp.eq.s32.totalorder %s36, 1
      %p127 = por %p125, %p126
      %p128 = scmp.ne.s32.totalorder %s117, %s118
      %p129 = scmp.eq.s32.totalorder %s36, 0
      %p130 = por %p128, %p129
      %p131 = scmp.ne.s32.totalorder %s117, %s118
      %p132 = scmp.eq.s32.totalorder %s37, 1
      %p133 = por %p131, %p132
      %p135 = scmp.ne.s32.totalorder %s118, %s134
      %p136 = scmp.eq.s32.totalorder %s37, 0
      %p137 = por %p135, %p136
      %s138 = ssub.s32 %s31, %s38
      %p139 = scmp.eq.s32.totalorder %s138, 0
      %s141 = sadd.s32 %s140, 1
      %s142 = scalar_select %p139, %s140, %s141
      %p145 = pneg %p139
      %p146 = scmp.eq.s32.totalorder %s31, 1
      %p147 = por %p145, %p146
      %p148 = scmp.ne.s32.totalorder %s140, %s143
      %p149 = scmp.eq.s32.totalorder %s31, 0
      %p150 = por %p148, %p149
      %p151 = scmp.ne.s32.totalorder %s140, %s143
      %p152 = scmp.eq.s32.totalorder %s36, 1
      %p153 = por %p151, %p152
      %p154 = scmp.ne.s32.totalorder %s143, %s144
      %p155 = scmp.eq.s32.totalorder %s36, 0
      %p156 = por %p154, %p155
      %p157 = scmp.ne.s32.totalorder %s143, %s144
      %p158 = scmp.eq.s32.totalorder %s37, 1
      %p159 = por %p157, %p158
      %p161 = scmp.ne.s32.totalorder %s144, %s160
      %p162 = scmp.eq.s32.totalorder %s37, 0
      %p163 = por %p161, %p162
      %s164 = ssub.s32 %s31, %s38
      %p165 = scmp.eq.s32.totalorder %s164, 0
      %s167 = sadd.s32 %s166, 1
      %s168 = scalar_select %p165, %s166, %s167
      %p171 = pneg %p165
      %p172 = scmp.eq.s32.totalorder %s31, 1
      %p173 = por %p171, %p172
      %p174 = scmp.ne.s32.totalorder %s166, %s169
      %p175 = scmp.eq.s32.totalorder %s31, 0
      %p176 = por %p174, %p175
      %p177 = scmp.ne.s32.totalorder %s166, %s169
      %p178 = scmp.eq.s32.totalorder %s36, 1
      %p179 = por %p177, %p178
      %p180 = scmp.ne.s32.totalorder %s169, %s170
      %p181 = scmp.eq.s32.totalorder %s36, 0
      %p182 = por %p180, %p181
      %p183 = scmp.ne.s32.totalorder %s169, %s170
      %p184 = scmp.eq.s32.totalorder %s37, 1
      %p185 = por %p183, %p184
      %p187 = scmp.ne.s32.totalorder %s170, %s186
      %p188 = scmp.eq.s32.totalorder %s37, 0
      %p189 = por %p187, %p188
      %s191 = sadd.s32 %s190, 1
      %p194 = scmp.eq.s32.totalorder %s31, 1
      %p195 = scmp.ne.s32.totalorder %s190, %s192
      %p196 = scmp.eq.s32.totalorder %s31, 0
      %p197 = por %p195, %p196
      %p198 = scmp.ne.s32.totalorder %s190, %s192
      %p199 = scmp.eq.s32.totalorder %s36, 1
      %p200 = por %p198, %p199
      %p201 = scmp.ne.s32.totalorder %s192, %s193
      %p202 = scmp.eq.s32.totalorder %s36, 0
      %p203 = por %p201, %p202
      %p204 = scmp.ne.s32.totalorder %s192, %s193
      %p205 = scmp.eq.s32.totalorder %s37, 1
      %p206 = por %p204, %p205
      %p208 = scmp.ne.s32.totalorder %s193, %s207
      %p209 = scmp.eq.s32.totalorder %s37, 0
      %p210 = por %p208, %p209
      %s212 = sadd.s32 %s211, 1
      %p215 = scmp.eq.s32.totalorder %s31, 1
      %p216 = scmp.ne.s32.totalorder %s211, %s213
      %p217 = scmp.eq.s32.totalorder %s31, 0
      %p218 = por %p216, %p217
      %p219 = scmp.ne.s32.totalorder %s211, %s213
      %p220 = scmp.eq.s32.totalorder %s36, 1
      %p221 = por %p219, %p220
      %p222 = scmp.ne.s32.totalorder %s213, %s214
      %p223 = scmp.eq.s32.totalorder %s36, 0
      %p224 = por %p222, %p223
      %p225 = scmp.ne.s32.totalorder %s213, %s214
      %p226 = scmp.eq.s32.totalorder %s37, 1
      %p227 = por %p225, %p226
      %p229 = scmp.ne.s32.totalorder %s214, %s228
      %p230 = scmp.eq.s32.totalorder %s37, 0
      %p231 = por %p229, %p230
      %s233 = sadd.s32 %s232, 1
      %p236 = scmp.eq.s32.totalorder %s31, 1
      %p237 = scmp.ne.s32.totalorder %s232, %s234
      %p238 = scmp.eq.s32.totalorder %s31, 0
      %p239 = por %p237, %p238
      %p240 = scmp.ne.s32.totalorder %s232, %s234
      %p241 = scmp.eq.s32.totalorder %s36, 1
      %p242 = por %p240, %p241
      %p243 = scmp.ne.s32.totalorder %s234, %s235
      %p244 = scmp.eq.s32.totalorder %s36, 0
      %p245 = por %p243, %p244
      %p246 = scmp.ne.s32.totalorder %s234, %s235
      %p247 = scmp.eq.s32.totalorder %s37, 1
      %p248 = por %p246, %p247
      %p250 = scmp.ne.s32.totalorder %s235, %s249
      %p251 = scmp.eq.s32.totalorder %s37, 0
      %p252 = por %p250, %p251
      %s254 = sadd.s32 %s253, 1
      %p257 = scmp.eq.s32.totalorder %s31, 1
      %p258 = scmp.ne.s32.totalorder %s253, %s255
      %p259 = scmp.eq.s32.totalorder %s31, 0
      %p260 = por %p258, %p259
      %p261 = scmp.ne.s32.totalorder %s253, %s255
      %p262 = scmp.eq.s32.totalorder %s36, 1
      %p263 = por %p261, %p262
      %p264 = scmp.ne.s32.totalorder %s255, %s256
      %p265 = scmp.eq.s32.totalorder %s36, 0
      %p266 = por %p264, %p265
      %p267 = scmp.ne.s32.totalorder %s255, %s256
      %p268 = scmp.eq.s32.totalorder %s37, 1
      %p269 = por %p267, %p268
      %p271 = scmp.ne.s32.totalorder %s256, %s270
      %p272 = scmp.eq.s32.totalorder %s37, 0
      %p273 = por %p271, %p272
      %s275 = sadd.s32 %s274, 1
      %p278 = scmp.eq.s32.totalorder %s31, 1
      %p279 = scmp.ne.s32.totalorder %s274, %s276
      %p280 = scmp.eq.s32.totalorder %s31, 0
      %p281 = por %p279, %p280
      %p282 = scmp.ne.s32.totalorder %s274, %s276
      %p283 = scmp.eq.s32.totalorder %s36, 1
      %p284 = por %p282, %p283
      %p285 = scmp.ne.s32.totalorder %s276, %s277
      %p286 = scmp.eq.s32.totalorder %s36, 0
      %p287 = por %p285, %p286
      %p288 = scmp.ne.s32.totalorder %s276, %s277
      %p289 = scmp.eq.s32.totalorder %s37, 1
      %p290 = por %p288, %p289
      %p292 = scmp.ne.s32.totalorder %s277, %s291
      %p293 = scmp.eq.s32.totalorder %s37, 0
      %p294 = por %p292, %p293
      %s296 = sadd.s32 %s295, 1
      %p299 = scmp.eq.s32.totalorder %s31, 1
      %p300 = scmp.ne.s32.totalorder %s295, %s297
      %p301 = scmp.eq.s32.totalorder %s31, 0
      %p302 = por %p300, %p301
      %p303 = scmp.ne.s32.totalorder %s295, %s297
      %p304 = scmp.eq.s32.totalorder %s36, 1
      %p305 = por %p303, %p304
      %p306 = scmp.ne.s32.totalorder %s297, %s298
      %p307 = scmp.eq.s32.totalorder %s36, 0
      %p308 = por %p306, %p307
      %p309 = scmp.ne.s32.totalorder %s297, %s298
      %p310 = scmp.eq.s32.totalorder %s37, 1
      %p311 = por %p309, %p310
      %p313 = scmp.ne.s32.totalorder %s298, %s312
      %p314 = scmp.eq.s32.totalorder %s37, 0
      %p315 = por %p313, %p314
      %s317 = sadd.s32 %s316, 1
      %p320 = scmp.eq.s32.totalorder %s31, 1
      %p321 = scmp.ne.s32.totalorder %s316, %s318
      %p322 = scmp.eq.s32.totalorder %s31, 0
      %p323 = por %p321, %p322
      %p324 = scmp.ne.s32.totalorder %s316, %s318
      %p325 = scmp.eq.s32.totalorder %s36, 1
      %p326 = por %p324, %p325
      %p327 = scmp.ne.s32.totalorder %s318, %s319
      %p328 = scmp.eq.s32.totalorder %s36, 0
      %p329 = por %p327, %p328
      %p330 = scmp.ne.s32.totalorder %s318, %s319
      %p331 = scmp.eq.s32.totalorder %s37, 1
      %p332 = por %p330, %p331
      %p334 = scmp.ne.s32.totalorder %s319, %s333
      %p335 = scmp.eq.s32.totalorder %s37, 0
      %p336 = por %p334, %p335
      %s338 = sadd.s32 %s337, 1
      %p341 = scmp.eq.s32.totalorder %s31, 1
      %p342 = scmp.ne.s32.totalorder %s337, %s339
      %p343 = scmp.eq.s32.totalorder %s31, 0
      %p344 = por %p342, %p343
      %p345 = scmp.ne.s32.totalorder %s337, %s339
      %p346 = scmp.eq.s32.totalorder %s36, 1
      %p347 = por %p345, %p346
      %p348 = scmp.ne.s32.totalorder %s339, %s340
      %p349 = scmp.eq.s32.totalorder %s36, 0
      %p350 = por %p348, %p349
      %p351 = scmp.ne.s32.totalorder %s339, %s340
      %p352 = scmp.eq.s32.totalorder %s37, 1
      %p353 = por %p351, %p352
      %p355 = scmp.ne.s32.totalorder %s340, %s354
      %p356 = scmp.eq.s32.totalorder %s37, 0
      %p357 = por %p355, %p356
      %s359 = sadd.s32 %s358, 1
      %p362 = scmp.eq.s32.totalorder %s31, 1
      %p363 = scmp.ne.s32.totalorder %s358, %s360
      %p364 = scmp.eq.s32.totalorder %s31, 0
      %p365 = por %p363, %p364
      %p366 = scmp.ne.s32.totalorder %s358, %s360
      %p367 = scmp.eq.s32.totalorder %s36, 1
      %p368 = por %p366, %p367
      %p369 = scmp.ne.s32.totalorder %s360, %s361
      %p370 = scmp.eq.s32.totalorder %s36, 0
      %p371 = por %p369, %p370
      %p372 = scmp.ne.s32.totalorder %s360, %s361
      %p373 = scmp.eq.s32.totalorder %s37, 1
      %p374 = por %p372, %p373
      %p376 = scmp.ne.s32.totalorder %s361, %s375
      %p377 = scmp.eq.s32.totalorder %s37, 0
      %p378 = por %p376, %p377
      %s380 = sadd.s32 %s379, 1
      %p383 = scmp.eq.s32.totalorder %s31, 1
      %p384 = scmp.ne.s32.totalorder %s379, %s381
      %p385 = scmp.eq.s32.totalorder %s31, 0
      %p386 = por %p384, %p385
      %p387 = scmp.ne.s32.totalorder %s379, %s381
      %p388 = scmp.eq.s32.totalorder %s36, 1
      %p389 = por %p387, %p388
      %p390 = scmp.ne.s32.totalorder %s381, %s382
      %p391 = scmp.eq.s32.totalorder %s36, 0
      %p392 = por %p390, %p391
      %p393 = scmp.ne.s32.totalorder %s381, %s382
      %p394 = scmp.eq.s32.totalorder %s37, 1
      %p395 = por %p393, %p394
      %p397 = scmp.ne.s32.totalorder %s382, %s396
      %p398 = scmp.eq.s32.totalorder %s37, 0
      %p399 = por %p397, %p398
      %s401 = sadd.s32 %s400, 1
      %p404 = scmp.eq.s32.totalorder %s31, 1
      %p405 = scmp.ne.s32.totalorder %s400, %s402
      %p406 = scmp.eq.s32.totalorder %s31, 0
      %p407 = por %p405, %p406
      %p408 = scmp.ne.s32.totalorder %s400, %s402
      %p409 = scmp.eq.s32.totalorder %s36, 1
      %p410 = por %p408, %p409
      %p411 = scmp.ne.s32.totalorder %s402, %s403
      %p412 = scmp.eq.s32.totalorder %s36, 0
      %p413 = por %p411, %p412
      %p414 = scmp.ne.s32.totalorder %s402, %s403
      %p415 = scmp.eq.s32.totalorder %s37, 1
      %p416 = por %p414, %p415
      %p418 = scmp.ne.s32.totalorder %s403, %s417
      %p419 = scmp.eq.s32.totalorder %s37, 0
      %p420 = por %p418, %p419
      %s422 = sadd.s32 %s421, 1
      %p425 = scmp.eq.s32.totalorder %s31, 1
      %p426 = scmp.ne.s32.totalorder %s421, %s423
      %p427 = scmp.eq.s32.totalorder %s31, 0
      %p428 = por %p426, %p427
      %p429 = scmp.ne.s32.totalorder %s421, %s423
      %p430 = scmp.eq.s32.totalorder %s36, 1
      %p431 = por %p429, %p430
      %p432 = scmp.ne.s32.totalorder %s423, %s424
      %p433 = scmp.eq.s32.totalorder %s36, 0
      %p434 = por %p432, %p433
      %p435 = scmp.ne.s32.totalorder %s423, %s424
      %p436 = scmp.eq.s32.totalorder %s37, 1
      %p437 = por %p435, %p436
      %p439 = scmp.ne.s32.totalorder %s424, %s438
      %p440 = scmp.eq.s32.totalorder %s37, 0
      %p441 = por %p439, %p440
      %s443 = sadd.s32 %s442, 1
      %p446 = scmp.eq.s32.totalorder %s31, 1
      %p447 = scmp.ne.s32.totalorder %s442, %s444
      %p448 = scmp.eq.s32.totalorder %s31, 0
      %p449 = por %p447, %p448
      %p450 = scmp.ne.s32.totalorder %s442, %s444
      %p451 = scmp.eq.s32.totalorder %s36, 1
      %p452 = por %p450, %p451
      %p453 = scmp.ne.s32.totalorder %s444, %s445
      %p454 = scmp.eq.s32.totalorder %s36, 0
      %p455 = por %p453, %p454
      %p456 = scmp.ne.s32.totalorder %s444, %s445
      %p457 = scmp.eq.s32.totalorder %s37, 1
      %p458 = por %p456, %p457
      %p460 = scmp.ne.s32.totalorder %s445, %s459
      %p461 = scmp.eq.s32.totalorder %s37, 0
      %p462 = por %p460, %p461
      %s464 = sadd.s32 %s463, 1
      %p467 = scmp.eq.s32.totalorder %s31, 1
      %p468 = scmp.ne.s32.totalorder %s463, %s465
      %p469 = scmp.eq.s32.totalorder %s31, 0
      %p470 = por %p468, %p469
      %p471 = scmp.ne.s32.totalorder %s463, %s465
      %p472 = scmp.eq.s32.totalorder %s36, 1
      %p473 = por %p471, %p472
      %p474 = scmp.ne.s32.totalorder %s465, %s466
      %p475 = scmp.eq.s32.totalorder %s36, 0
      %p476 = por %p474, %p475
      %p477 = scmp.ne.s32.totalorder %s465, %s466
      %p478 = scmp.eq.s32.totalorder %s37, 1
      %p479 = por %p477, %p478
      %p481 = scmp.ne.s32.totalorder %s466, %s480
      %p482 = scmp.eq.s32.totalorder %s37, 0
      %p483 = por %p481, %p482
      %s484 = ssub.s32 %s31, %s38
      %p485 = scmp.eq.s32.totalorder %s484, 0
      %s487 = sadd.s32 %s486, 1
      %s488 = scalar_select %p485, %s486, %s487
      %p491 = pneg %p485
      %p492 = scmp.eq.s32.totalorder %s31, 1
      %p493 = por %p491, %p492
      %p494 = scmp.ne.s32.totalorder %s486, %s489
      %p495 = scmp.eq.s32.totalorder %s31, 0
      %p496 = por %p494, %p495
      %p497 = scmp.ne.s32.totalorder %s486, %s489
      %p498 = scmp.eq.s32.totalorder %s36, 1
      %p499 = por %p497, %p498
      %p500 = scmp.ne.s32.totalorder %s489, %s490
      %p501 = scmp.eq.s32.totalorder %s36, 0
      %p502 = por %p500, %p501
      %p503 = scmp.ne.s32.totalorder %s489, %s490
      %p504 = scmp.eq.s32.totalorder %s37, 1
      %p505 = por %p503, %p504
      %p507 = scmp.ne.s32.totalorder %s490, %s506
      %p508 = scmp.eq.s32.totalorder %s37, 0
      %p509 = por %p507, %p508
      %p510 = scmp.le.s32.totalorder 1, %s31
      %p511 = scmp.lt.s32.totalorder %s31, 3
      %p512 = pnand %p510, %p511
      %p513 = pneg %p512
      // Predicated region
      $region9: #{tpu_custom_call.1} parent=5 // pred_check
        _
      $region10: #{tpu_custom_call.1} parent=5 // pred_check_branch
        %515 = sbr.rel (%p512) target = $region12
      $region11: #{tpu_custom_call.1} parent=5 // pred_region
        %s516 = ssub.s32 %s31, 1
        // Predicated region
        $region13: #{tpu_custom_call.1} parent=11 // pred_check
          %p517 = pneg %p52
        $region14: #{tpu_custom_call.1} parent=11 // pred_check_branch
          %519 = sbr.rel (%p517) target = $region16
        $region15: #{tpu_custom_call.1} parent=11 // pred_region
          _
        $region16: #{tpu_custom_call.1} parent=11 // pred_fallthru
          _
        // Predicated region
        $region17: #{tpu_custom_call.1} parent=11 // pred_check
          %p520 = pneg %p203
        $region18: #{tpu_custom_call.1} parent=11 // pred_check_branch
          %522 = sbr.rel (%p520) target = $region20
        $region19: #{tpu_custom_call.1} parent=11 // pred_region
          _
        $region20: #{tpu_custom_call.1} parent=11 // pred_fallthru
          _
        // Predicated region
        $region21: #{tpu_custom_call.1} parent=11 // pred_check
          %p523 = pneg %p224
        $region22: #{tpu_custom_call.1} parent=11 // pred_check_branch
          %525 = sbr.rel (%p523) target = $region24
        $region23: #{tpu_custom_call.1} parent=11 // pred_region
          _
        $region24: #{tpu_custom_call.1} parent=11 // pred_fallthru
          _
        // Predicated region
        $region25: #{tpu_custom_call.1} parent=11 // pred_check
          %p526 = pneg %p245
        $region26: #{tpu_custom_call.1} parent=11 // pred_check_branch
          %528 = sbr.rel (%p526) target = $region28
        $region27: #{tpu_custom_call.1} parent=11 // pred_region
          _
        $region28: #{tpu_custom_call.1} parent=11 // pred_fallthru
          _
        // Predicated region
        $region29: #{tpu_custom_call.1} parent=11 // pred_check
          %p529 = pneg %p266
        $region30: #{tpu_custom_call.1} parent=11 // pred_check_branch
          %531 = sbr.rel (%p529) target = $region32
        $region31: #{tpu_custom_call.1} parent=11 // pred_region
          _
        $region32: #{tpu_custom_call.1} parent=11 // pred_fallthru
          _
        // Predicated region
        $region33: #{tpu_custom_call.1} parent=11 // pred_check
          %p532 = pneg %p287
        $region34: #{tpu_custom_call.1} parent=11 // pred_check_branch
          %534 = sbr.rel (%p532) target = $region36
        $region35: #{tpu_custom_call.1} parent=11 // pred_region
          _
        $region36: #{tpu_custom_call.1} parent=11 // pred_fallthru
          _
        // Predicated region
        $region37: #{tpu_custom_call.1} parent=11 // pred_check
          %p535 = pneg %p308
        $region38: #{tpu_custom_call.1} parent=11 // pred_check_branch
          %537 = sbr.rel (%p535) target = $region40
        $region39: #{tpu_custom_call.1} parent=11 // pred_region
          _
        $region40: #{tpu_custom_call.1} parent=11 // pred_fallthru
          _
        // Predicated region
        $region41: #{tpu_custom_call.1} parent=11 // pred_check
          %p538 = pneg %p329
        $region42: #{tpu_custom_call.1} parent=11 // pred_check_branch
          %540 = sbr.rel (%p538) target = $region44
        $region43: #{tpu_custom_call.1} parent=11 // pred_region
          _
        $region44: #{tpu_custom_call.1} parent=11 // pred_fallthru
          _
        // Predicated region
        $region45: #{tpu_custom_call.1} parent=11 // pred_check
          %p541 = pneg %p350
        $region46: #{tpu_custom_call.1} parent=11 // pred_check_branch
          %543 = sbr.rel (%p541) target = $region48
        $region47: #{tpu_custom_call.1} parent=11 // pred_region
          _
        $region48: #{tpu_custom_call.1} parent=11 // pred_fallthru
          _
        // Predicated region
        $region49: #{tpu_custom_call.1} parent=11 // pred_check
          %p544 = pneg %p371
        $region50: #{tpu_custom_call.1} parent=11 // pred_check_branch
          %546 = sbr.rel (%p544) target = $region52
        $region51: #{tpu_custom_call.1} parent=11 // pred_region
          _
        $region52: #{tpu_custom_call.1} parent=11 // pred_fallthru
          _
        // Predicated region
        $region53: #{tpu_custom_call.1} parent=11 // pred_check
          %p547 = pneg %p392
        $region54: #{tpu_custom_call.1} parent=11 // pred_check_branch
          %549 = sbr.rel (%p547) target = $region56
        $region55: #{tpu_custom_call.1} parent=11 // pred_region
          _
        $region56: #{tpu_custom_call.1} parent=11 // pred_fallthru
          _
        // Predicated region
        $region57: #{tpu_custom_call.1} parent=11 // pred_check
          %p550 = pneg %p413
        $region58: #{tpu_custom_call.1} parent=11 // pred_check_branch
          %552 = sbr.rel (%p550) target = $region60
        $region59: #{tpu_custom_call.1} parent=11 // pred_region
          _
        $region60: #{tpu_custom_call.1} parent=11 // pred_fallthru
          _
        // Predicated region
        $region61: #{tpu_custom_call.1} parent=11 // pred_check
          %p553 = pneg %p434
        $region62: #{tpu_custom_call.1} parent=11 // pred_check_branch
          %555 = sbr.rel (%p553) target = $region64
        $region63: #{tpu_custom_call.1} parent=11 // pred_region
          _
        $region64: #{tpu_custom_call.1} parent=11 // pred_fallthru
          _
        // Predicated region
        $region65: #{tpu_custom_call.1} parent=11 // pred_check
          %p556 = pneg %p455
        $region66: #{tpu_custom_call.1} parent=11 // pred_check_branch
          %558 = sbr.rel (%p556) target = $region68
        $region67: #{tpu_custom_call.1} parent=11 // pred_region
          _
        $region68: #{tpu_custom_call.1} parent=11 // pred_fallthru
          _
      $region12: #{tpu_custom_call.1} parent=5 // pred_fallthru
        _
      %p559 = scmp.lt.s32.totalorder %s31, 2
      // Predicated region
      $region69: #{tpu_custom_call.1} parent=5 // pred_check
        %p560 = pneg %p559
      $region70: #{tpu_custom_call.1} parent=5 // pred_check_branch
        %562 = sbr.rel (%p560) target = $region72
      $region71: #{tpu_custom_call.1} parent=5 // pred_region
        // Predicated region
        $region73: #{tpu_custom_call.1} parent=71 // pred_check
          %p563 = pneg %p72
        $region74: #{tpu_custom_call.1} parent=71 // pred_check_branch
          %565 = sbr.rel (%p563) target = $region76
        $region75: #{tpu_custom_call.1} parent=71 // pred_region
          %p566 = scmp.lt.s32.totalorder %s31, 1
          %s567 = scalar_select %p566, %s31, 1
          %s568 = smul.addr %s567, 8
          %s569 = scalar_lea.vmem %s1, %s568
        $region76: #{tpu_custom_call.1} parent=71 // pred_fallthru
          _
        // Predicated region
        $region77: #{tpu_custom_call.1} parent=71 // pred_check
          %p570 = pneg %p98
        $region78: #{tpu_custom_call.1} parent=71 // pred_check_branch
          %572 = sbr.rel (%p570) target = $region80
        $region79: #{tpu_custom_call.1} parent=71 // pred_region
          %p573 = scmp.lt.s32.totalorder %s31, 1
          %s574 = scalar_select %p573, %s31, 1
          %s575 = smul.addr %s574, 8
          %s576 = scalar_lea.vmem %s2, %s575
        $region80: #{tpu_custom_call.1} parent=71 // pred_fallthru
          _
        // Predicated region
        $region81: #{tpu_custom_call.1} parent=71 // pred_check
          %p577 = pneg %p124
        $region82: #{tpu_custom_call.1} parent=71 // pred_check_branch
          %579 = sbr.rel (%p577) target = $region84
        $region83: #{tpu_custom_call.1} parent=71 // pred_region
          %p580 = scmp.lt.s32.totalorder %s31, 1
          %s581 = scalar_select %p580, %s31, 1
          %s582 = scalar_lea.vmem %s3, %s581
        $region84: #{tpu_custom_call.1} parent=71 // pred_fallthru
          _
        // Predicated region
        $region85: #{tpu_custom_call.1} parent=71 // pred_check
          %p583 = pneg %p150
        $region86: #{tpu_custom_call.1} parent=71 // pred_check_branch
          %585 = sbr.rel (%p583) target = $region88
        $region87: #{tpu_custom_call.1} parent=71 // pred_region
          %p586 = scmp.lt.s32.totalorder %s31, 1
          %s587 = scalar_select %p586, %s31, 1
          %s588 = smul.addr %s587, 4
          %s589 = scalar_lea.vmem %s4, %s588
        $region88: #{tpu_custom_call.1} parent=71 // pred_fallthru
          _
        // Predicated region
        $region89: #{tpu_custom_call.1} parent=71 // pred_check
          %p590 = pneg %p176
        $region90: #{tpu_custom_call.1} parent=71 // pred_check_branch
          %592 = sbr.rel (%p590) target = $region92
        $region91: #{tpu_custom_call.1} parent=71 // pred_region
          %p593 = scmp.lt.s32.totalorder %s31, 1
          %s594 = scalar_select %p593, %s31, 1
          %s595 = smul.addr %s594, 8
          %s596 = scalar_lea.vmem %s5, %s595
        $region92: #{tpu_custom_call.1} parent=71 // pred_fallthru
          _
      $region72: #{tpu_custom_call.1} parent=5 // pred_fallthru
        _
      %p597 = scmp.le.s32.totalorder 1, %s31
      %p598 = scmp.lt.s32.totalorder %s31, 3
      %p599 = pnand %p597, %p598
      %p600 = pneg %p599
      // Predicated region
      $region93: #{tpu_custom_call.1} parent=5 // pred_check
        _
      $region94: #{tpu_custom_call.1} parent=5 // pred_check_branch
        %602 = sbr.rel (%p599) target = $region96
      $region95: #{tpu_custom_call.1} parent=5 // pred_region
        %s603 = ssub.s32 %s31, 1
        %p604 = pneg %p52
        %p605 = pneg %p49
        %p606 = scmp.lt.s32.totalorder %s36, 1
        %s607 = scalar_select %p606, %s36, 1
        %s608 = smul.addr %s607, 8
        %s609 = scalar_lea.vmem %s1, %s608
        %p610 = pneg %p78
        %p611 = pneg %p75
        %p612 = scmp.lt.s32.totalorder %s36, 1
        %s613 = scalar_select %p612, %s36, 1
        %s614 = smul.addr %s613, 8
        %s615 = scalar_lea.vmem %s2, %s614
        %p616 = pneg %p104
        %p617 = pneg %p101
        %p618 = scmp.lt.s32.totalorder %s36, 1
        %s619 = scalar_select %p618, %s36, 1
        %s620 = scalar_lea.vmem %s3, %s619
        %p621 = pneg %p130
        %p622 = pneg %p127
        %p623 = scmp.lt.s32.totalorder %s36, 1
        %s624 = scalar_select %p623, %s36, 1
        %s625 = smul.addr %s624, 4
        %s626 = scalar_lea.vmem %s4, %s625
        %p627 = pneg %p156
        %p628 = pneg %p153
        %p629 = scmp.lt.s32.totalorder %s36, 1
        %s630 = scalar_select %p629, %s36, 1
        %s631 = smul.addr %s630, 8
        %s632 = scalar_lea.vmem %s5, %s631
        %p633 = pneg %p182
        %p634 = pneg %p179
        %p635 = pneg %p203
        %p636 = pneg %p200
        %p637 = pneg %p224
        %p638 = pneg %p221
        %p639 = pneg %p245
        %p640 = pneg %p242
        %p641 = pneg %p266
        %p642 = pneg %p263
        %p643 = pneg %p287
        %p644 = pneg %p284
        %p645 = pneg %p308
        %p646 = pneg %p305
        %p647 = pneg %p329
        %p648 = pneg %p326
        %p649 = pneg %p350
        %p650 = pneg %p347
        %p651 = pneg %p371
        %p652 = pneg %p368
        %p653 = pneg %p392
        %p654 = pneg %p389
        %p655 = pneg %p413
        %p656 = pneg %p410
        %p657 = pneg %p434
        %p658 = pneg %p431
        %p659 = pneg %p455
        %p660 = pneg %p452
        %p661 = pneg %p476
        %p662 = pneg %p473
        %p663 = pneg %p502
        %p664 = pneg %p499
        %s665 = sand.u32 %s489, 1
        %s666 = scalar_lea.sflag [#allocation6], %s665
        %s667 = sand.u32 %s489, 1
        %s668 = smul.addr %s667, 8
        %s669 = scalar_lea.vmem [#allocation5], %s668
        %p670 = scmp.lt.s32.totalorder %s36, 1
        %s671 = scalar_select %p670, %s36, 1
        %s672 = smul.addr %s671, 8
        %s673 = scalar_lea.vmem %s1, %s672
        %p674 = scmp.lt.s32.totalorder %s36, 1
        %s675 = scalar_select %p674, %s36, 1
        %s676 = smul.addr %s675, 8
        %s677 = scalar_lea.vmem %s2, %s676
        %p678 = scmp.lt.s32.totalorder %s36, 1
        %s679 = scalar_select %p678, %s36, 1
        %s680 = scalar_lea.vmem %s3, %s679
        %p681 = scmp.lt.s32.totalorder %s36, 1
        %s682 = scalar_select %p681, %s36, 1
        %s683 = smul.addr %s682, 4
        %s684 = scalar_lea.vmem %s4, %s683
        %p685 = scmp.lt.s32.totalorder %s36, 1
        %s686 = scalar_select %p685, %s36, 1
        %s687 = smul.addr %s686, 8
        %s688 = scalar_lea.vmem %s5, %s687
        %p690 = scmp.eq.s32.totalorder %s36, 0
        // Predicated region
        $region97: #{tpu_custom_call.1} parent=95 // pred_check
          %p691 = pneg %p690
        $region98: #{tpu_custom_call.1} parent=95 // pred_check_branch
          %693 = sbr.rel (%p691) target = $region100
        $region99: #{tpu_custom_call.1} parent=95 // pred_region
          %v694 = vld [vmem:[%s0] sm:$0xff]
          %v695 = vlaneseq
          %v696 = vand.u32 %v695, 127
          %697 = vset.pattern.permute.xlu0 0
          %698 = vperm.xlu0 %697, %v694
          %v699 = vpop.permute.xlu0 %698
          %vm700 = vcmp.eq.s32.totalorder %v699, %v696
          %v701 = vsel %vm700, 1, 0
          %v702 = vcvt.s32.f32 %v701
          %v703 = vld [vmem:[%s6] sm:$0x1f]
          %vm704 = vcmask 39936
          %v706 = vsel %vm704, %v702, 0
          %vm708 = vcmask 1044480
          %v710 = vsel %vm708, %v703, 0
          %712 = vmatprep.subr.mxu0 0.0
          %713 = vmatpush1.msra.mxu0 0.0
          %714 = vmatprep.subr.mxu0 0.0
          %715 = vmatpush1.msra.mxu0 0.0
          %716 = vmatprep.subr.mxu0 0.0
          %717 = vmatpush1.msra.mxu0 0.0
          %718 = vmatprep.subr.mxu0 0.0
          %719 = vmatpush1.msra.mxu0 0.0
          %720 = vmatprep.subr.mxu0 0.0
          %721 = vmatpush1.msra.mxu0 0.0
          %722 = vmatprep.subr.mxu0 0.0
          %723 = vmatpush1.msra.mxu0 0.0
          %724 = vmatprep.subr.mxu0 0.0
          %725 = vmatpush1.msra.mxu0 0.0
          %726 = vmatprep.subr.mxu0 0.0
          %727 = vmatpush1.msra.mxu0 0.0
          %728 = vmatprep.subr.mxu0 0.0
          %729 = vmatpush1.msra.mxu0 0.0
          %730 = vmatprep.subr.mxu0 0.0
          %731 = vmatpush1.msra.mxu0 0.0
          %732 = vmatprep.subr.mxu0 0.0
          %733 = vmatpush1.msra.mxu0 0.0
          %734 = vmatprep.subr.mxu0 0.0
          %735 = vmatpush1.msra.mxu0 0.0
          %736 = vmatprep.subr.mxu0 0.0
          %737 = vmatpush1.msra.mxu0 0.0
          %738 = vmatprep.subr.mxu0 0.0
          %739 = vmatpush1.msra.mxu0 0.0
          %740 = vmatprep.subr.mxu0 0.0
          %741 = vmatpush1.msra.mxu0 0.0
          %742 = vmatprep.subr.mxu0 0.0
          %743 = vmatpush1.msra.mxu0 %v710
          %744 = vmatprep.subr.mxu0 0.0
          %745 = vmatpush2.msra.mxu0 0.0
          %746 = vmatprep.subr.mxu0 0.0
          %747 = vmatpush2.msra.mxu0 0.0
          %748 = vmatprep.subr.mxu0 0.0
          %749 = vmatpush2.msra.mxu0 0.0
          %750 = vmatprep.subr.mxu0 0.0
          %751 = vmatpush2.msra.mxu0 0.0
          %752 = vmatprep.subr.mxu0 0.0
          %753 = vmatpush2.msra.mxu0 0.0
          %754 = vmatprep.subr.mxu0 0.0
          %755 = vmatpush2.msra.mxu0 0.0
          %756 = vmatprep.subr.mxu0 0.0
          %757 = vmatpush2.msra.mxu0 0.0
          %758 = vmatprep.subr.mxu0 0.0
          %759 = vmatpush2.msra.mxu0 0.0
          %760 = vmatprep.subr.mxu0 0.0
          %761 = vmatpush2.msra.mxu0 0.0
          %762 = vmatprep.subr.mxu0 0.0
          %763 = vmatpush2.msra.mxu0 0.0
          %764 = vmatprep.subr.mxu0 0.0
          %765 = vmatpush2.msra.mxu0 0.0
          %766 = vmatprep.subr.mxu0 0.0
          %767 = vmatpush2.msra.mxu0 0.0
          %768 = vmatprep.subr.mxu0 0.0
          %769 = vmatpush2.msra.mxu0 0.0
          %770 = vmatprep.subr.mxu0 0.0
          %771 = vmatpush2.msra.mxu0 0.0
          %772 = vmatprep.subr.mxu0 0.0
          %773 = vmatpush2.msra.mxu0 0.0
          %774 = vmatprep.subr.mxu0 0.0
          %775 = vmatpush2.msra.mxu0 0.0
          %776 = vmatprep.mubr.f32.mxu0 0.0
          %777 = vmatmul.mubr.f32.gmra.mxu0 %v706
          %v778 = vpop.f32.mrf.mxu0
          %v779 = vadd.f32 0.0, %v778
          %v780 = vpop.f32.mrf.mxu0
          %781 = vdwg.mxu0
          %vm782 = vcmask 261120
          %783 = vst.msk [vmem:[#allocation2] sm:$0xff] %vm782, %v779
          %784 = vst [vmem:[#allocation3] sm:$0xff] 0.0
        $region100: #{tpu_custom_call.1} parent=95 // pred_fallthru
          _
        %v785 = vld [vmem:[#allocation2] sm:$0xff]
        %v786 = vld [vmem:[%s673] sm:$0xff]
        %v787 = vld [vmem:[%s677] sm:$0xff]
        %v788 = vlaneseq
        %v789 = vand.u32 %v788, 127
        %790 = vset.pattern.permute.xlu0 0
        %791 = vperm.xlu0 %790, %v786
        %v792 = vpop.permute.xlu0 %791
        %vm793 = vcmp.eq.s32.totalorder %v792, %v789
        %v794 = vsel %vm793, 1, 0
        %v795 = vcvt.s32.f32 %v794
        %796 = vset.pattern.permute.xlu0 0
        %797 = vperm.xlu0 %796, %v787
        %v798 = vpop.permute.xlu0 %797
        %vm799 = vcmp.eq.s32.totalorder %v798, %v789
        %v800 = vsel %vm799, 1, 0
        %v801 = vcvt.s32.f32 %v800
        %vm802 = vcmask 64512
        %v804 = vsel %vm802, %v795, 0
        %v807 = vsel %vm802, %v801, 0
        %809 = vmatprep.subr.mxu0 0.0
        %810 = vmatpush1.msra.mxu0 0.0
        %811 = vmatprep.subr.mxu0 0.0
        %812 = vmatpush1.msra.mxu0 0.0
        %813 = vmatprep.subr.mxu0 0.0
        %814 = vmatpush1.msra.mxu0 0.0
        %815 = vmatprep.subr.mxu0 0.0
        %816 = vmatpush1.msra.mxu0 0.0
        %817 = vmatprep.subr.mxu0 0.0
        %818 = vmatpush1.msra.mxu0 0.0
        %819 = vmatprep.subr.mxu0 0.0
        %820 = vmatpush1.msra.mxu0 0.0
        %821 = vmatprep.subr.mxu0 0.0
        %822 = vmatpush1.msra.mxu0 0.0
        %823 = vmatprep.subr.mxu0 0.0
        %824 = vmatpush1.msra.mxu0 0.0
        %825 = vmatprep.subr.mxu0 0.0
        %826 = vmatpush1.msra.mxu0 0.0
        %827 = vmatprep.subr.mxu0 0.0
        %828 = vmatpush1.msra.mxu0 0.0
        %829 = vmatprep.subr.mxu0 0.0
        %830 = vmatpush1.msra.mxu0 0.0
        %831 = vmatprep.subr.mxu0 0.0
        %832 = vmatpush1.msra.mxu0 0.0
        %833 = vmatprep.subr.mxu0 0.0
        %834 = vmatpush1.msra.mxu0 0.0
        %835 = vmatprep.subr.mxu0 0.0
        %836 = vmatpush1.msra.mxu0 0.0
        %837 = vmatprep.subr.mxu0 0.0
        %838 = vmatpush1.msra.mxu0 0.0
        %839 = vmatprep.subr.mxu0 0.0
        %840 = vmatpush1.msra.mxu0 %v785
        %841 = vmatprep.subr.mxu0 0.0
        %842 = vmatpush2.msra.mxu0 0.0
        %843 = vmatprep.subr.mxu0 0.0
        %844 = vmatpush2.msra.mxu0 0.0
        %845 = vmatprep.subr.mxu0 0.0
        %846 = vmatpush2.msra.mxu0 0.0
        %847 = vmatprep.subr.mxu0 0.0
        %848 = vmatpush2.msra.mxu0 0.0
        %849 = vmatprep.subr.mxu0 0.0
        %850 = vmatpush2.msra.mxu0 0.0
        %851 = vmatprep.subr.mxu0 0.0
        %852 = vmatpush2.msra.mxu0 0.0
        %853 = vmatprep.subr.mxu0 0.0
        %854 = vmatpush2.msra.mxu0 0.0
        %855 = vmatprep.subr.mxu0 0.0
        %856 = vmatpush2.msra.mxu0 0.0
        %857 = vmatprep.subr.mxu0 0.0
        %858 = vmatpush2.msra.mxu0 0.0
        %859 = vmatprep.subr.mxu0 0.0
        %860 = vmatpush2.msra.mxu0 0.0
        %861 = vmatprep.subr.mxu0 0.0
        %862 = vmatpush2.msra.mxu0 0.0
        %863 = vmatprep.subr.mxu0 0.0
        %864 = vmatpush2.msra.mxu0 0.0
        %865 = vmatprep.subr.mxu0 0.0
        %866 = vmatpush2.msra.mxu0 0.0
        %867 = vmatprep.subr.mxu0 0.0
        %868 = vmatpush2.msra.mxu0 0.0
        %869 = vmatprep.subr.mxu0 0.0
        %870 = vmatpush2.msra.mxu0 0.0
        %871 = vmatprep.subr.mxu0 0.0
        %872 = vmatpush2.msra.mxu0 0.0
        %873 = vmatprep.mubr.f32.mxu0 0.0
        %874 = vmatmul.mubr.f32.gmra.mxu0 %v804
        %v875 = vpop.f32.mrf.mxu0
        %v876 = vadd.f32 0.0, %v875
        %v877 = vpop.f32.mrf.mxu0
        %878 = vmatprep.mubr.f32.mxu0 0.0
        %879 = vmatmul.mubr.f32.gmra.mxu0 %v807
        %v880 = vpop.f32.mrf.mxu0
        %v881 = vadd.f32 0.0, %v880
        %v882 = vpop.f32.mrf.mxu0
        %883 = vdwg.mxu0
        %v884 = vld [vmem:[%s684] sm:$0xf]
        %v885 = vld [vmem:[%s7] sm:$0xf]
        %v886 = vld [vmem:[%s7 + $0x4] sm:$0xf]
        %v887 = vld [vmem:[%s8] sm:$0x1]
        %v889 = vlaneseq
        %v890 = vshrl.u32 %v889, 7
        %v891 = vsub.s32 0, %v890
        %v892 = vrot.slane %v887, %v891
        %v896 = vunpack.c.l.b16 %v885
        %v897 = vunpack.c.l.b16 %v886
        %v898 = vpack.c.b16 %v897, %v896
        %vm900 = vcmask 130048
        %v902 = vsel %vm900, %v884, 0
        %904 = vmatprep.subr.bf16.mxu0 0
        %905 = vmatpush1.bf16.msra.mxu0 0
        %906 = vmatprep.subr.bf16.mxu0 0
        %907 = vmatpush1.bf16.msra.mxu0 0
        %908 = vmatprep.subr.bf16.mxu0 0
        %909 = vmatpush1.bf16.msra.mxu0 0
        %910 = vmatprep.subr.bf16.mxu0 0
        %911 = vmatpush1.bf16.msra.mxu0 0
        %912 = vmatprep.subr.bf16.mxu0 0
        %913 = vmatpush1.bf16.msra.mxu0 0
        %914 = vmatprep.subr.bf16.mxu0 0
        %915 = vmatpush1.bf16.msra.mxu0 0
        %916 = vmatprep.subr.bf16.mxu0 0
        %917 = vmatpush1.bf16.msra.mxu0 0
        %918 = vmatprep.subr.bf16.mxu0 0
        %919 = vmatpush1.bf16.msra.mxu0 %v898
        %920 = vmatprep.subr.bf16.mxu0 0
        %921 = vmatpush2.bf16.msra.mxu0 0
        %922 = vmatprep.subr.bf16.mxu0 0
        %923 = vmatpush2.bf16.msra.mxu0 0
        %924 = vmatprep.subr.bf16.mxu0 0
        %925 = vmatpush2.bf16.msra.mxu0 0
        %926 = vmatprep.subr.bf16.mxu0 0
        %927 = vmatpush2.bf16.msra.mxu0 0
        %928 = vmatprep.subr.bf16.mxu0 0
        %929 = vmatpush2.bf16.msra.mxu0 0
        %930 = vmatprep.subr.bf16.mxu0 0
        %931 = vmatpush2.bf16.msra.mxu0 0
        %932 = vmatprep.subr.bf16.mxu0 0
        %933 = vmatpush2.bf16.msra.mxu0 0
        %934 = vmatprep.subr.bf16.mxu0 0
        %935 = vmatpush2.bf16.msra.mxu0 0
        %936 = vmatprep.mubr.bf16.mxu0 0
        %937 = vmatmul.mubr.bf16.gmra.mxu0 %v902
        %v938 = vpop.f32.mrf.mxu0
        %v939 = vadd.f32 %v892, %v938
        %v940 = vpop.f32.mrf.mxu0
        %v941 = vpop.f32.mrf.mxu0
        %v942 = vpop.f32.mrf.mxu0
        %943 = vdwg.mxu0
        %v944 = vxor.u32 %v939, 2147483648
        %v945 = vmul.f32 %v944, 1.442695
        %v946 = vpow.pop %v945
        %v947 = vadd.f32 %v946, 1.0
        %v948 = vrcp.pop %v947
        %v949 = vmul.f32 1.0, %v948
        %v950 = vmul.f32 %v939, %v949
        %v951 = vpack.c.bf16 %v950, %v950
        %v952 = vld [vmem:[%s9] sm:$0xf]
        %v953 = vld [vmem:[%s9 + $0x4] sm:$0xf]
        %v954 = vld [vmem:[%s9 + $0x8] sm:$0xf]
        %v955 = vld [vmem:[%s9 + $0xc] sm:$0xf]
        %v956 = vld [vmem:[%s10] sm:$0x1]
        %v958 = vlaneseq
        %v959 = vshrl.u32 %v958, 7
        %v960 = vsub.s32 0, %v959
        %v961 = vrot.slane %v956, %v960
        %v967 = vunpack.c.l.b16 %v952
        %v968 = vunpack.c.l.b16 %v953
        %v969 = vunpack.c.l.b16 %v954
        %v970 = vunpack.c.l.b16 %v955
        %v971 = vpack.c.b16 %v968, %v967
        %v972 = vpack.c.b16 %v970, %v969
        %vm975 = vcmask 261120
        %v977 = vsel %vm975, %v951, 0
        %979 = vmatprep.subr.bf16.mxu0 0
        %980 = vmatpush1.bf16.msra.mxu0 0
        %981 = vmatprep.subr.bf16.mxu0 0
        %982 = vmatpush1.bf16.msra.mxu0 0
        %983 = vmatprep.subr.bf16.mxu0 0
        %984 = vmatpush1.bf16.msra.mxu0 0
        %985 = vmatprep.subr.bf16.mxu0 0
        %986 = vmatpush1.bf16.msra.mxu0 0
        %987 = vmatprep.subr.bf16.mxu0 0
        %988 = vmatpush1.bf16.msra.mxu0 0
        %989 = vmatprep.subr.bf16.mxu0 0
        %990 = vmatpush1.bf16.msra.mxu0 0
        %991 = vmatprep.subr.bf16.mxu0 0
        %992 = vmatpush1.bf16.msra.mxu0 %v972
        %993 = vmatprep.subr.bf16.mxu0 0
        %994 = vmatpush1.bf16.msra.mxu0 %v971
        %995 = vmatprep.subr.bf16.mxu0 0
        %996 = vmatpush2.bf16.msra.mxu0 0
        %997 = vmatprep.subr.bf16.mxu0 0
        %998 = vmatpush2.bf16.msra.mxu0 0
        %999 = vmatprep.subr.bf16.mxu0 0
        %1000 = vmatpush2.bf16.msra.mxu0 0
        %1001 = vmatprep.subr.bf16.mxu0 0
        %1002 = vmatpush2.bf16.msra.mxu0 0
        %1003 = vmatprep.subr.bf16.mxu0 0
        %1004 = vmatpush2.bf16.msra.mxu0 0
        %1005 = vmatprep.subr.bf16.mxu0 0
        %1006 = vmatpush2.bf16.msra.mxu0 0
        %1007 = vmatprep.subr.bf16.mxu0 0
        %1008 = vmatpush2.bf16.msra.mxu0 0
        %1009 = vmatprep.subr.bf16.mxu0 0
        %1010 = vmatpush2.bf16.msra.mxu0 0
        %1011 = vmatprep.mubr.bf16.mxu0 0
        %1012 = vmatmul.mubr.bf16.gmra.mxu0 %v977
        %v1013 = vpop.f32.mrf.mxu0
        %v1014 = vadd.f32 %v961, %v1013
        %v1015 = vpop.f32.mrf.mxu0
        %v1016 = vpop.f32.mrf.mxu0
        %v1017 = vpop.f32.mrf.mxu0
        %1018 = vdwg.mxu0
        %1019 = vst.msk [vmem:[%s669] sm:$0xff] %vm975, %v1014
        %1021 = vrot.lane.b32.xlu0 %v881, 32
        %v1022 = vpop.permute.xlu0 %1021
        %1025 = vrot.lane.b32.xlu0 %v1014, 64
        %v1026 = vpop.permute.xlu0 %1025
        %v1028 = vsel %vm975, %v876, %v1022
        %vm1029 = vcmask 523264
        %v1030 = vsel %vm1029, %v1028, %v1026
        %v1031 = vpack.c.bf16 %v1030, %v1030
        %v1032 = vld [vmem:[%s11] sm:$0xf]
        %v1033 = vld [vmem:[%s11 + $0x4] sm:$0xf]
        %v1034 = vld [vmem:[%s11 + $0x8] sm:$0xf]
        %v1035 = vld [vmem:[%s11 + $0xc] sm:$0xf]
        %v1036 = vld [vmem:[%s11 + $0x10] sm:$0xf]
        %v1037 = vld [vmem:[%s11 + $0x14] sm:$0xf]
        %v1038 = vld [vmem:[%s11 + $0x18] sm:$0xf]
        %v1039 = vld [vmem:[%s11 + $0x1c] sm:$0xf]
        %v1040 = vld [vmem:[%s11 + $0x20] sm:$0xf]
        %v1041 = vld [vmem:[%s11 + $0x24] sm:$0xf]
        %v1042 = vld [vmem:[%s11 + $0x28] sm:$0xf]
        %v1043 = vld [vmem:[%s11 + $0x2c] sm:$0xf]
        %v1044 = vld [vmem:[%s12] sm:$0x1]
        %v1046 = vlaneseq
        %v1047 = vshrl.u32 %v1046, 7
        %v1048 = vsub.s32 0, %v1047
        %v1049 = vrot.slane %v1044, %v1048
        %v1063 = vunpack.c.l.b16 %v1032
        %v1064 = vunpack.c.l.b16 %v1033
        %v1065 = vunpack.c.l.b16 %v1034
        %v1066 = vunpack.c.l.b16 %v1035
        %v1067 = vunpack.c.l.b16 %v1036
        %v1068 = vunpack.c.l.b16 %v1037
        %v1069 = vunpack.c.l.b16 %v1038
        %v1070 = vunpack.c.l.b16 %v1039
        %v1071 = vunpack.c.l.b16 %v1040
        %v1072 = vunpack.c.l.b16 %v1041
        %v1073 = vunpack.c.l.b16 %v1042
        %v1074 = vunpack.c.l.b16 %v1043
        %v1075 = vpack.c.b16 %v1064, %v1063
        %v1076 = vpack.c.b16 %v1066, %v1065
        %v1077 = vpack.c.b16 %v1068, %v1067
        %v1078 = vpack.c.b16 %v1070, %v1069
        %v1079 = vpack.c.b16 %v1072, %v1071
        %v1080 = vpack.c.b16 %v1074, %v1073
        %vm1087 = vcmask 785408
        %v1089 = vsel %vm1087, %v1031, 0
        %1091 = vmatprep.subr.bf16.mxu0 0
        %1092 = vmatpush1.bf16.msra.mxu0 0
        %1093 = vmatprep.subr.bf16.mxu0 0
        %1094 = vmatpush1.bf16.msra.mxu0 0
        %1095 = vmatprep.subr.bf16.mxu0 0
        %1096 = vmatpush1.bf16.msra.mxu0 %v1080
        %1097 = vmatprep.subr.bf16.mxu0 0
        %1098 = vmatpush1.bf16.msra.mxu0 %v1079
        %1099 = vmatprep.subr.bf16.mxu0 0
        %1100 = vmatpush1.bf16.msra.mxu0 %v1078
        %1101 = vmatprep.subr.bf16.mxu0 0
        %1102 = vmatpush1.bf16.msra.mxu0 %v1077
        %1103 = vmatprep.subr.bf16.mxu0 0
        %1104 = vmatpush1.bf16.msra.mxu0 %v1076
        %1105 = vmatprep.subr.bf16.mxu0 0
        %1106 = vmatpush1.bf16.msra.mxu0 %v1075
        %1107 = vmatprep.subr.bf16.mxu0 0
        %1108 = vmatpush2.bf16.msra.mxu0 0
        %1109 = vmatprep.subr.bf16.mxu0 0
        %1110 = vmatpush2.bf16.msra.mxu0 0
        %1111 = vmatprep.subr.bf16.mxu0 0
        %1112 = vmatpush2.bf16.msra.mxu0 0
        %1113 = vmatprep.subr.bf16.mxu0 0
        %1114 = vmatpush2.bf16.msra.mxu0 0
        %1115 = vmatprep.subr.bf16.mxu0 0
        %1116 = vmatpush2.bf16.msra.mxu0 0
        %1117 = vmatprep.subr.bf16.mxu0 0
        %1118 = vmatpush2.bf16.msra.mxu0 0
        %1119 = vmatprep.subr.bf16.mxu0 0
        %1120 = vmatpush2.bf16.msra.mxu0 0
        %1121 = vmatprep.subr.bf16.mxu0 0
        %1122 = vmatpush2.bf16.msra.mxu0 0
        %1123 = vmatprep.mubr.bf16.mxu0 0
        %1124 = vmatmul.mubr.bf16.gmra.mxu0 %v1089
        %v1125 = vpop.f32.mrf.mxu0
        %v1126 = vadd.f32 %v1049, %v1125
        %v1127 = vpop.f32.mrf.mxu0
        %v1128 = vpop.f32.mrf.mxu0
        %v1129 = vpop.f32.mrf.mxu0
        %1130 = vdwg.mxu0
        %v1131 = vxor.u32 %v1126, 2147483648
        %v1132 = vmul.f32 %v1131, 1.442695
        %v1133 = vpow.pop %v1132
        %v1134 = vadd.f32 %v1133, 1.0
        %v1135 = vrcp.pop %v1134
        %v1136 = vmul.f32 1.0, %v1135
        %v1137 = vmul.f32 %v1126, %v1136
        %v1138 = vpack.c.bf16 %v1137, %v1137
        %v1139 = vld [vmem:[%s13] sm:$0xf]
        %v1140 = vld [vmem:[%s13 + $0x4] sm:$0xf]
        %v1141 = vld [vmem:[%s13 + $0x8] sm:$0xf]
        %v1142 = vld [vmem:[%s13 + $0xc] sm:$0xf]
        %v1143 = vld [vmem:[%s13 + $0x10] sm:$0xf]
        %v1144 = vld [vmem:[%s13 + $0x14] sm:$0xf]
        %v1145 = vld [vmem:[%s13 + $0x18] sm:$0xf]
        %v1146 = vld [vmem:[%s13 + $0x1c] sm:$0xf]
        %v1147 = vld [vmem:[%s14] sm:$0x1]
        %v1149 = vlaneseq
        %v1150 = vshrl.u32 %v1149, 7
        %v1151 = vsub.s32 0, %v1150
        %v1152 = vrot.slane %v1147, %v1151
        %v1162 = vunpack.c.l.b16 %v1139
        %v1163 = vunpack.c.l.b16 %v1140
        %v1164 = vunpack.c.l.b16 %v1141
        %v1165 = vunpack.c.l.b16 %v1142
        %v1166 = vunpack.c.l.b16 %v1143
        %v1167 = vunpack.c.l.b16 %v1144
        %v1168 = vunpack.c.l.b16 %v1145
        %v1169 = vunpack.c.l.b16 %v1146
        %v1170 = vpack.c.b16 %v1163, %v1162
        %v1171 = vpack.c.b16 %v1165, %v1164
        %v1172 = vpack.c.b16 %v1167, %v1166
        %v1173 = vpack.c.b16 %v1169, %v1168
        %v1179 = vsel %vm1029, %v1138, 0
        %1181 = vmatprep.subr.bf16.mxu0 0
        %1182 = vmatpush1.bf16.msra.mxu0 0
        %1183 = vmatprep.subr.bf16.mxu0 0
        %1184 = vmatpush1.bf16.msra.mxu0 0
        %1185 = vmatprep.subr.bf16.mxu0 0
        %1186 = vmatpush1.bf16.msra.mxu0 0
        %1187 = vmatprep.subr.bf16.mxu0 0
        %1188 = vmatpush1.bf16.msra.mxu0 0
        %1189 = vmatprep.subr.bf16.mxu0 0
        %1190 = vmatpush1.bf16.msra.mxu0 %v1173
        %1191 = vmatprep.subr.bf16.mxu0 0
        %1192 = vmatpush1.bf16.msra.mxu0 %v1172
        %1193 = vmatprep.subr.bf16.mxu0 0
        %1194 = vmatpush1.bf16.msra.mxu0 %v1171
        %1195 = vmatprep.subr.bf16.mxu0 0
        %1196 = vmatpush1.bf16.msra.mxu0 %v1170
        %1197 = vmatprep.subr.bf16.mxu0 0
        %1198 = vmatpush2.bf16.msra.mxu0 0
        %1199 = vmatprep.subr.bf16.mxu0 0
        %1200 = vmatpush2.bf16.msra.mxu0 0
        %1201 = vmatprep.subr.bf16.mxu0 0
        %1202 = vmatpush2.bf16.msra.mxu0 0
        %1203 = vmatprep.subr.bf16.mxu0 0
        %1204 = vmatpush2.bf16.msra.mxu0 0
        %1205 = vmatprep.subr.bf16.mxu0 0
        %1206 = vmatpush2.bf16.msra.mxu0 0
        %1207 = vmatprep.subr.bf16.mxu0 0
        %1208 = vmatpush2.bf16.msra.mxu0 0
        %1209 = vmatprep.subr.bf16.mxu0 0
        %1210 = vmatpush2.bf16.msra.mxu0 0
        %1211 = vmatprep.subr.bf16.mxu0 0
        %1212 = vmatpush2.bf16.msra.mxu0 0
        %1213 = vmatprep.mubr.bf16.mxu0 0
        %1214 = vmatmul.mubr.bf16.gmra.mxu0 %v1179
        %v1215 = vpop.f32.mrf.mxu0
        %v1216 = vadd.f32 %v1152, %v1215
        %v1217 = vpop.f32.mrf.mxu0
        %v1218 = vpop.f32.mrf.mxu0
        %v1219 = vpop.f32.mrf.mxu0
        %1220 = vdwg.mxu0
        %v1221 = vmul.f32 %v1216, %v876
        %v1222 = vld [vmem:[%s680] sm:$0x1]
        %v1223 = vlaneseq
        %v1224 = vshrl.u32 %v1223, 7
        %v1225 = vlaneseq
        %v1226 = vshrl.u32 %v1225, 7
        %v1227 = vsub.s32 0, %v1226
        %v1228 = vrot.slane %v1222, %v1227
        %vm1229 = vcmp.eq.s32.totalorder %v1228, %v1224
        %v1230 = vsel %vm1229, 1, 0
        %v1231 = vcvt.s32.f32 %v1230
        %v1232 = vld [vmem:[%s688] sm:$0xff]
        %1234 = vset.pattern.permute.xlu0 0
        %1235 = vperm.xlu0 %1234, %v1232
        %v1236 = vpop.permute.xlu0 %1235
        %v1238 = vmul.f32 %v1216, %v1236
        %1239 = vset.pattern.permute.xlu0 1
        %1240 = vperm.xlu0 %1239, %v1232
        %v1241 = vpop.permute.xlu0 %1240
        %v1243 = vmul.f32 %v1216, %v1241
        %1244 = vset.pattern.permute.xlu0 2
        %1245 = vperm.xlu0 %1244, %v1232
        %v1246 = vpop.permute.xlu0 %1245
        %v1248 = vmul.f32 %v1216, %v1246
        %1250 = vrot.lane.b32.xlu0 %v1243, 32
        %v1251 = vpop.permute.xlu0 %1250
        %1254 = vrot.lane.b32.xlu0 %v1248, 64
        %v1255 = vpop.permute.xlu0 %1254
        %v1257 = vsel %vm975, %v1221, %v1238
        %v1258 = vsel %vm1029, %v1257, %v1251
        %v1259 = vsel %vm1087, %v1258, %v1255
        %v1260 = vld [vmem:[#allocation3] sm:$0xff]
        %v1262 = vsel %vm802, %v1231, 0
        %1264 = vmatprep.subr.mxu0 0.0
        %1265 = vmatpush1.msra.mxu0 0.0
        %1266 = vmatprep.subr.mxu0 0.0
        %1267 = vmatpush1.msra.mxu0 0.0
        %1268 = vmatprep.subr.mxu0 0.0
        %1269 = vmatpush1.msra.mxu0 0.0
        %1270 = vmatprep.subr.mxu0 0.0
        %1271 = vmatpush1.msra.mxu0 0.0
        %1272 = vmatprep.subr.mxu0 0.0
        %1273 = vmatpush1.msra.mxu0 0.0
        %1274 = vmatprep.subr.mxu0 0.0
        %1275 = vmatpush1.msra.mxu0 0.0
        %1276 = vmatprep.subr.mxu0 0.0
        %1277 = vmatpush1.msra.mxu0 0.0
        %1278 = vmatprep.subr.mxu0 0.0
        %1279 = vmatpush1.msra.mxu0 0.0
        %1280 = vmatprep.subr.mxu0 0.0
        %1281 = vmatpush1.msra.mxu0 0.0
        %1282 = vmatprep.subr.mxu0 0.0
        %1283 = vmatpush1.msra.mxu0 0.0
        %1284 = vmatprep.subr.mxu0 0.0
        %1285 = vmatpush1.msra.mxu0 0.0
        %1286 = vmatprep.subr.mxu0 0.0
        %1287 = vmatpush1.msra.mxu0 0.0
        %1288 = vmatprep.subr.mxu0 0.0
        %1289 = vmatpush1.msra.mxu0 0.0
        %1290 = vmatprep.subr.mxu0 0.0
        %1291 = vmatpush1.msra.mxu0 0.0
        %1292 = vmatprep.subr.mxu0 0.0
        %1293 = vmatpush1.msra.mxu0 0.0
        %1294 = vmatprep.subr.mxu0 0.0
        %1295 = vmatpush1.msra.mxu0 %v1259
        %1296 = vmatprep.subr.mxu0 0.0
        %1297 = vmatpush2.msra.mxu0 0.0
        %1298 = vmatprep.subr.mxu0 0.0
        %1299 = vmatpush2.msra.mxu0 0.0
        %1300 = vmatprep.subr.mxu0 0.0
        %1301 = vmatpush2.msra.mxu0 0.0
        %1302 = vmatprep.subr.mxu0 0.0
        %1303 = vmatpush2.msra.mxu0 0.0
        %1304 = vmatprep.subr.mxu0 0.0
        %1305 = vmatpush2.msra.mxu0 0.0
        %1306 = vmatprep.subr.mxu0 0.0
        %1307 = vmatpush2.msra.mxu0 0.0
        %1308 = vmatprep.subr.mxu0 0.0
        %1309 = vmatpush2.msra.mxu0 0.0
        %1310 = vmatprep.subr.mxu0 0.0
        %1311 = vmatpush2.msra.mxu0 0.0
        %1312 = vmatprep.subr.mxu0 0.0
        %1313 = vmatpush2.msra.mxu0 0.0
        %1314 = vmatprep.subr.mxu0 0.0
        %1315 = vmatpush2.msra.mxu0 0.0
        %1316 = vmatprep.subr.mxu0 0.0
        %1317 = vmatpush2.msra.mxu0 0.0
        %1318 = vmatprep.subr.mxu0 0.0
        %1319 = vmatpush2.msra.mxu0 0.0
        %1320 = vmatprep.subr.mxu0 0.0
        %1321 = vmatpush2.msra.mxu0 0.0
        %1322 = vmatprep.subr.mxu0 0.0
        %1323 = vmatpush2.msra.mxu0 0.0
        %1324 = vmatprep.subr.mxu0 0.0
        %1325 = vmatpush2.msra.mxu0 0.0
        %1326 = vmatprep.subr.mxu0 0.0
        %1327 = vmatpush2.msra.mxu0 0.0
        %1328 = vmatprep.mubr.f32.mxu0 0.0
        %1329 = vmatmul.mubr.f32.gmra.mxu0 %v1262
        %v1330 = vpop.f32.mrf.mxu0
        %v1331 = vadd.f32 0.0, %v1330
        %v1332 = vpop.f32.mrf.mxu0
        %1333 = vdwg.mxu0
        %v1334 = vadd.f32 %v1260, %v1331
        %1335 = vst [vmem:[#allocation3] sm:$0xff] %v1334
        %p1336 = scmp.eq.s32.totalorder %s36, 1
        // Predicated region
        $region101: #{tpu_custom_call.1} parent=95 // pred_check
          %p1337 = pneg %p1336
        $region102: #{tpu_custom_call.1} parent=95 // pred_check_branch
          %1339 = sbr.rel (%p1337) target = $region104
        $region103: #{tpu_custom_call.1} parent=95 // pred_region
          %v1340 = vld [vmem:[#allocation3] sm:$0xff]
          %1342 = vrot.lane.b32.xlu0 %v1340, 32
          %v1343 = vpop.permute.xlu0 %1342
          %v1345 = vsel %vm975, %v785, %v1343
          %v1346 = vpack.c.bf16 %v1345, %v1345
          %v1347 = vld [vmem:[%s15] sm:$0xf]
          %v1348 = vld [vmem:[%s15 + $0x4] sm:$0xf]
          %v1349 = vld [vmem:[%s15 + $0x8] sm:$0xf]
          %v1350 = vld [vmem:[%s15 + $0xc] sm:$0xf]
          %v1351 = vld [vmem:[%s15 + $0x10] sm:$0xf]
          %v1352 = vld [vmem:[%s15 + $0x14] sm:$0xf]
          %v1353 = vld [vmem:[%s15 + $0x18] sm:$0xf]
          %v1354 = vld [vmem:[%s15 + $0x1c] sm:$0xf]
          %v1355 = vld [vmem:[%s16] sm:$0x1]
          %v1357 = vlaneseq
          %v1358 = vshrl.u32 %v1357, 7
          %v1359 = vsub.s32 0, %v1358
          %v1360 = vrot.slane %v1355, %v1359
          %v1370 = vunpack.c.l.b16 %v1347
          %v1371 = vunpack.c.l.b16 %v1348
          %v1372 = vunpack.c.l.b16 %v1349
          %v1373 = vunpack.c.l.b16 %v1350
          %v1374 = vunpack.c.l.b16 %v1351
          %v1375 = vunpack.c.l.b16 %v1352
          %v1376 = vunpack.c.l.b16 %v1353
          %v1377 = vunpack.c.l.b16 %v1354
          %v1378 = vpack.c.b16 %v1371, %v1370
          %v1379 = vpack.c.b16 %v1373, %v1372
          %v1380 = vpack.c.b16 %v1375, %v1374
          %v1381 = vpack.c.b16 %v1377, %v1376
          %v1387 = vsel %vm1029, %v1346, 0
          %1389 = vmatprep.subr.bf16.mxu0 0
          %1390 = vmatpush1.bf16.msra.mxu0 0
          %1391 = vmatprep.subr.bf16.mxu0 0
          %1392 = vmatpush1.bf16.msra.mxu0 0
          %1393 = vmatprep.subr.bf16.mxu0 0
          %1394 = vmatpush1.bf16.msra.mxu0 0
          %1395 = vmatprep.subr.bf16.mxu0 0
          %1396 = vmatpush1.bf16.msra.mxu0 0
          %1397 = vmatprep.subr.bf16.mxu0 0
          %1398 = vmatpush1.bf16.msra.mxu0 %v1381
          %1399 = vmatprep.subr.bf16.mxu0 0
          %1400 = vmatpush1.bf16.msra.mxu0 %v1380
          %1401 = vmatprep.subr.bf16.mxu0 0
          %1402 = vmatpush1.bf16.msra.mxu0 %v1379
          %1403 = vmatprep.subr.bf16.mxu0 0
          %1404 = vmatpush1.bf16.msra.mxu0 %v1378
          %1405 = vmatprep.subr.bf16.mxu0 0
          %1406 = vmatpush2.bf16.msra.mxu0 0
          %1407 = vmatprep.subr.bf16.mxu0 0
          %1408 = vmatpush2.bf16.msra.mxu0 0
          %1409 = vmatprep.subr.bf16.mxu0 0
          %1410 = vmatpush2.bf16.msra.mxu0 0
          %1411 = vmatprep.subr.bf16.mxu0 0
          %1412 = vmatpush2.bf16.msra.mxu0 0
          %1413 = vmatprep.subr.bf16.mxu0 0
          %1414 = vmatpush2.bf16.msra.mxu0 0
          %1415 = vmatprep.subr.bf16.mxu0 0
          %1416 = vmatpush2.bf16.msra.mxu0 0
          %1417 = vmatprep.subr.bf16.mxu0 0
          %1418 = vmatpush2.bf16.msra.mxu0 0
          %1419 = vmatprep.subr.bf16.mxu0 0
          %1420 = vmatpush2.bf16.msra.mxu0 0
          %1421 = vmatprep.mubr.bf16.mxu0 0
          %1422 = vmatmul.mubr.bf16.gmra.mxu0 %v1387
          %v1423 = vpop.f32.mrf.mxu0
          %v1424 = vadd.f32 %v1360, %v1423
          %v1425 = vpop.f32.mrf.mxu0
          %v1426 = vpop.f32.mrf.mxu0
          %v1427 = vpop.f32.mrf.mxu0
          %1428 = vdwg.mxu0
          %v1429 = vxor.u32 %v1424, 2147483648
          %v1430 = vmul.f32 %v1429, 1.442695
          %v1431 = vpow.pop %v1430
          %v1432 = vadd.f32 %v1431, 1.0
          %v1433 = vrcp.pop %v1432
          %v1434 = vmul.f32 1.0, %v1433
          %v1435 = vmul.f32 %v1424, %v1434
          %v1436 = vpack.c.bf16 %v1435, %v1435
          %v1437 = vld [vmem:[%s17] sm:$0xf]
          %v1438 = vld [vmem:[%s17 + $0x4] sm:$0xf]
          %v1439 = vld [vmem:[%s17 + $0x8] sm:$0xf]
          %v1440 = vld [vmem:[%s17 + $0xc] sm:$0xf]
          %v1441 = vld [vmem:[%s18] sm:$0x1]
          %v1443 = vlaneseq
          %v1444 = vshrl.u32 %v1443, 7
          %v1445 = vsub.s32 0, %v1444
          %v1446 = vrot.slane %v1441, %v1445
          %v1452 = vunpack.c.l.b16 %v1437
          %v1453 = vunpack.c.l.b16 %v1438
          %v1454 = vunpack.c.l.b16 %v1439
          %v1455 = vunpack.c.l.b16 %v1440
          %v1456 = vpack.c.b16 %v1453, %v1452
          %v1457 = vpack.c.b16 %v1455, %v1454
          %v1461 = vsel %vm975, %v1436, 0
          %1463 = vmatprep.subr.bf16.mxu0 0
          %1464 = vmatpush1.bf16.msra.mxu0 0
          %1465 = vmatprep.subr.bf16.mxu0 0
          %1466 = vmatpush1.bf16.msra.mxu0 0
          %1467 = vmatprep.subr.bf16.mxu0 0
          %1468 = vmatpush1.bf16.msra.mxu0 0
          %1469 = vmatprep.subr.bf16.mxu0 0
          %1470 = vmatpush1.bf16.msra.mxu0 0
          %1471 = vmatprep.subr.bf16.mxu0 0
          %1472 = vmatpush1.bf16.msra.mxu0 0
          %1473 = vmatprep.subr.bf16.mxu0 0
          %1474 = vmatpush1.bf16.msra.mxu0 0
          %1475 = vmatprep.subr.bf16.mxu0 0
          %1476 = vmatpush1.bf16.msra.mxu0 %v1457
          %1477 = vmatprep.subr.bf16.mxu0 0
          %1478 = vmatpush1.bf16.msra.mxu0 %v1456
          %1479 = vmatprep.subr.bf16.mxu0 0
          %1480 = vmatpush2.bf16.msra.mxu0 0
          %1481 = vmatprep.subr.bf16.mxu0 0
          %1482 = vmatpush2.bf16.msra.mxu0 0
          %1483 = vmatprep.subr.bf16.mxu0 0
          %1484 = vmatpush2.bf16.msra.mxu0 0
          %1485 = vmatprep.subr.bf16.mxu0 0
          %1486 = vmatpush2.bf16.msra.mxu0 0
          %1487 = vmatprep.subr.bf16.mxu0 0
          %1488 = vmatpush2.bf16.msra.mxu0 0
          %1489 = vmatprep.subr.bf16.mxu0 0
          %1490 = vmatpush2.bf16.msra.mxu0 0
          %1491 = vmatprep.subr.bf16.mxu0 0
          %1492 = vmatpush2.bf16.msra.mxu0 0
          %1493 = vmatprep.subr.bf16.mxu0 0
          %1494 = vmatpush2.bf16.msra.mxu0 0
          %1495 = vmatprep.mubr.bf16.mxu0 0
          %1496 = vmatmul.mubr.bf16.gmra.mxu0 %v1461
          %v1497 = vpop.f32.mrf.mxu0
          %v1498 = vadd.f32 %v1446, %v1497
          %v1499 = vpop.f32.mrf.mxu0
          %v1500 = vpop.f32.mrf.mxu0
          %v1501 = vpop.f32.mrf.mxu0
          %1502 = vdwg.mxu0
          %v1503 = vsel %vm975, %v1498, %v1340
          %1504 = vst [vmem:[#allocation3] sm:$0xff] %v1503
        $region104: #{tpu_custom_call.1} parent=95 // pred_fallthru
          _
        %s1505 = sand.u32 %s489, 1
        %s1506 = scalar_lea.sflag [#allocation6], %s1505
        %s1507 = sand.u32 %s489, 1
        %s1508 = smul.addr %s1507, 8
        %s1509 = scalar_lea.vmem [#allocation5], %s1508
        // Predicated region
        $region105: #{tpu_custom_call.1} parent=95 // pred_check
          %p1510 = pneg %p473
        $region106: #{tpu_custom_call.1} parent=95 // pred_check_branch
          %1512 = sbr.rel (%p1510) target = $region108
        $region107: #{tpu_custom_call.1} parent=95 // pred_region
          %s1514 = ssub.s32 128, 128
          %1515 = vsyncadd [#allocation4], %s1514
          %s1517 = sshll.u32 [#allocation3], 4
          %s1518 = int_to_ptr.vmem [resolvable:$true] %s1517
          %1520 = dma.vmem_to_hbm [thread:$0]  %s1518, 128, %s19, [#allocation4]
        $region108: #{tpu_custom_call.1} parent=95 // pred_fallthru
          _
        // Predicated region
        $region109: #{tpu_custom_call.1} parent=95 // pred_check
          %p1521 = pneg %p499
        $region110: #{tpu_custom_call.1} parent=95 // pred_check_branch
          %1523 = sbr.rel (%p1521) target = $region112
        $region111: #{tpu_custom_call.1} parent=95 // pred_region
          %s1525 = ssub.s32 128, 128
          %1526 = vsyncadd %s1506, %s1525
          %s1527 = smul.addr %s36, 128
          %s1528 = scalar_lea.hbm %s20, %s1527
          %s1530 = sshll.u32 %s1509, 4
          %s1531 = int_to_ptr.vmem [resolvable:$true] %s1530
          %1533 = dma.vmem_to_hbm [thread:$0]  %s1531, 128, %s1528, %s1506
        $region112: #{tpu_custom_call.1} parent=95 // pred_fallthru
          _
        // Predicated region
        $region113: #{tpu_custom_call.1} parent=95 // pred_check
          %p1534 = pneg %p473
        $region114: #{tpu_custom_call.1} parent=95 // pred_check_branch
          %1536 = sbr.rel (%p1534) target = $region116
        $region115: #{tpu_custom_call.1} parent=95 // pred_region
          %1537 = dma.done [#allocation4], 128
        $region116: #{tpu_custom_call.1} parent=95 // pred_fallthru
          _
      $region96: #{tpu_custom_call.1} parent=5 // pred_fallthru
        _
      %p1538 = scmp.le.s32.totalorder 2, %s31
      // Predicated region
      $region117: #{tpu_custom_call.1} parent=5 // pred_check
        %p1539 = pneg %p1538
      $region118: #{tpu_custom_call.1} parent=5 // pred_check_branch
        %1541 = sbr.rel (%p1539) target = $region120
      $region119: #{tpu_custom_call.1} parent=5 // pred_region
        %s1542 = ssub.s32 %s31, 2
        // Predicated region
        $region121: #{tpu_custom_call.1} parent=119 // pred_check
          %p1543 = pneg %p505
        $region122: #{tpu_custom_call.1} parent=119 // pred_check_branch
          %1545 = sbr.rel (%p1543) target = $region124
        $region123: #{tpu_custom_call.1} parent=119 // pred_region
          %s1546 = sand.u32 %s490, 1
          %s1547 = scalar_lea.sflag [#allocation6], %s1546
          %s1548 = sand.u32 %s490, 1
          %s1549 = smul.addr %s1548, 8
          %s1550 = scalar_lea.vmem [#allocation5], %s1549
          %1551 = dma.done %s1547, 128
        $region124: #{tpu_custom_call.1} parent=119 // pred_fallthru
          _
      $region120: #{tpu_custom_call.1} parent=5 // pred_fallthru
        _
    $region6: #{tpu_custom_call.1} parent=1 // loop_footer
      %s35 = sadd.s32 1, %s31
    $region7: #{tpu_custom_call.1} parent=1 // loop_footer_branch
      %30 = sbr.rel target = $region3
    $region8: #{tpu_custom_call.1} parent=1 // loop_exit
      _
    %1552 = vsyncpa [#allocation4], 1
    %s1553 = scalar_lea.sflag [#allocation4], 1
    %1554 = vsyncpa %s1553, 1
    %1555 = vsyncpa [#allocation6], 1
    %s1556 = scalar_lea.sflag [#allocation6], 1
    %1557 = vsyncpa %s1556, 1

</llo_original>
